<compile_context>
chip_gen: v5e
topology: v5e:2x2
jax: 0.10.0
libtpu: 0.0.40
codegen_flags: <defaults>
</compile_context>

<pallas_src>
import math
import functools

import jax
import jax.numpy as jnp
from jax import lax
from jax.experimental import pallas as pl
from jax.experimental.pallas import tpu as pltpu

_VMEM_LIMIT = 32 * 1024 * 1024  # raises v5e's 16 MiB scoped default; safe on v6e/v7x


# ---------------------------------------------------------------------------
# Pallas kernels
# ---------------------------------------------------------------------------

def decoder_block_kernel(x_ref,
                         wqkv_ref, bqkv_ref,
                         wo_ref, bo_ref,
                         g1_ref, be1_ref,
                         w1_ref, b1_ref, w2_ref, b2_ref,
                         g2_ref, be2_ref,
                         o_ref,
                         *, seq_len, d_model, num_heads):
    """One full decoder block for a single batch element (grid over batch)."""
    S, D, H = seq_len, d_model, num_heads
    hd = D // H
    scale = jnp.float32(1.0 / math.sqrt(hd))
    eps = jnp.float32(1e-5)

    x = x_ref[...]                                  # (S, D) f32 (batch dim squeezed)
    x_bf = x.astype(jnp.bfloat16)

    # ---- fused QKV projection: one (S, D) @ (D, 3D) MXU matmul ------------
    qkv = jnp.dot(x_bf, wqkv_ref[...],
                  preferred_element_type=jnp.float32) + bqkv_ref[...]
    q = jnp.swapaxes(qkv[:, 0 * D:1 * D].reshape(S, H, hd), 0, 1)   # (H, S, hd)
    k = jnp.swapaxes(qkv[:, 1 * D:2 * D].reshape(S, H, hd), 0, 1)
    v = jnp.swapaxes(qkv[:, 2 * D:3 * D].reshape(S, H, hd), 0, 1)

    # Fold the 1/sqrt(hd) scale into Q (H*S*hd elems) instead of scores (H*S*S).
    q = q * scale

    # ---- all heads at once; contraction over hd (no explicit kh.T) --------
    s = jnp.einsum('hqd,hkd->hqk',
                   q.astype(jnp.bfloat16), k.astype(jnp.bfloat16),
                   preferred_element_type=jnp.float32)               # (H, S, S)

    row = lax.broadcasted_iota(jnp.int32, (S, S), 0)
    col = lax.broadcasted_iota(jnp.int32, (S, S), 1)
    causal = (col <= row)[None, :, :]                                # (1, S, S)
    s = jnp.where(causal, s, jnp.float32(-1e30))
    s = s - jnp.max(s, axis=-1, keepdims=True)
    p = jnp.exp(s)
    p = p * pl.reciprocal(jnp.sum(p, axis=-1, keepdims=True), approx=True)

    ctx = jnp.einsum('hqk,hkd->hqd',
                     p.astype(jnp.bfloat16), v.astype(jnp.bfloat16),
                     preferred_element_type=jnp.float32)             # (H, S, hd)
    ctx = jnp.swapaxes(ctx, 0, 1).reshape(S, D)                      # (S, D)
    attn = jnp.dot(ctx.astype(jnp.bfloat16), wo_ref[...],
                   preferred_element_type=jnp.float32) + bo_ref[...]

    # ---- residual + LayerNorm 1 (post-LN, f32) -----------------------------
    h1 = x + attn
    mu = jnp.mean(h1, axis=-1, keepdims=True)
    var = jnp.mean((h1 - mu) ** 2, axis=-1, keepdims=True)
    h1 = (h1 - mu) * lax.rsqrt(var + eps) * g1_ref[...] + be1_ref[...]

    # ---- feed-forward (bf16 matmuls, f32 accumulation) ---------------------
    ff = jnp.dot(h1.astype(jnp.bfloat16), w1_ref[...],
                 preferred_element_type=jnp.float32) + b1_ref[...]
    ff = jnp.maximum(ff, 0.0)
    ff = jnp.dot(ff.astype(jnp.bfloat16), w2_ref[...],
                 preferred_element_type=jnp.float32) + b2_ref[...]

    # ---- residual + LayerNorm 2 --------------------------------------------
    h2 = h1 + ff
    mu = jnp.mean(h2, axis=-1, keepdims=True)
    var = jnp.mean((h2 - mu) ** 2, axis=-1, keepdims=True)
    h2 = (h2 - mu) * lax.rsqrt(var + eps) * g2_ref[...] + be2_ref[...]

    o_ref[...] = h2


def output_linear_kernel(x_ref, w_ref, b_ref, o_ref):
    """(rows, D) x (D, vocab-tile) -> (rows, vocab-tile), lane-dense output store."""
    o_ref[...] = (jnp.dot(x_ref[...].astype(jnp.bfloat16), w_ref[...],
                          preferred_element_type=jnp.float32)
                  + b_ref[...])


# ---------------------------------------------------------------------------
# Wrappers
# ---------------------------------------------------------------------------

def run_decoder_block(x, params, *, num_heads):
    """x: (B, S, D) fp32. params: dict of pre-transposed (bf16) weights."""
    B, S, D = x.shape
    F = params["w1"].shape[1]

    # Weights: constant block index across the batch grid -> resident in VMEM.
    full = lambda shape: pl.BlockSpec(shape, lambda b: (0,) * len(shape))

    kernel = functools.partial(decoder_block_kernel,
                               seq_len=S, d_model=D, num_heads=num_heads)

    return pl.pallas_call(
        kernel,
        out_shape=jax.ShapeDtypeStruct((B, S, D), jnp.float32),
        grid_spec=pltpu.PrefetchScalarGridSpec(
            num_scalar_prefetch=0,
            grid=(B,),
            in_specs=[
                pl.BlockSpec((None, S, D), lambda b: (b, 0, 0)),   # x (batch squeezed)
                full((D, 3 * D)), full((1, 3 * D)),                # wqkv, bqkv
                full((D, D)), full((1, D)),                        # wo, bo
                full((1, D)), full((1, D)),                        # ln1 gamma, beta
                full((D, F)), full((1, F)),                        # w1, b1
                full((F, D)), full((1, D)),                        # w2, b2
                full((1, D)), full((1, D)),                        # ln2 gamma, beta
            ],
            out_specs=pl.BlockSpec((None, S, D), lambda b: (b, 0, 0)),
        ),
        compiler_params=pltpu.CompilerParams(
            dimension_semantics=("parallel",),
            vmem_limit_bytes=_VMEM_LIMIT),
    )(x,
      params["wqkv"], params["bqkv"],
      params["wo"], params["bo"],
      params["ln1_g"], params["ln1_b"],
      params["w1"], params["b1"], params["w2"], params["b2"],
      params["ln2_g"], params["ln2_b"])


def _row_tile(M):
    """Pick a row tile: multiple of 8, >=2 tiles when possible (megacore)."""
    for t in (512, 256, 128, 64, 32, 16, 8):
        if M % t == 0 and M // t >= 2:
            return t
    return M


def run_output_layer(x, w, b):
    """x: (B, S, D) f32, w: (D, V) bf16, b: (1, V) f32 -> (B, S, V) f32."""
    B, S, D = x.shape
    V = w.shape[1]

    # Pad vocab to a 128-lane multiple so output stores are unmasked / lane-dense.
    Vp = ((V + 127) // 128) * 128
    if Vp != V:
        w = jnp.pad(w, ((0, 0), (0, Vp - V)))
        b = jnp.pad(b, ((0, 0), (0, Vp - V)))

    # Fold batch*seq into the matmul M dimension.
    M = B * S
    x2d = x.reshape(M, D)
    tM = _row_tile(M)
    tV = 512 if Vp % 512 == 0 else (256 if Vp % 256 == 0 else 128)

    out = pl.pallas_call(
        output_linear_kernel,
        out_shape=jax.ShapeDtypeStruct((M, Vp), jnp.float32),
        grid_spec=pltpu.PrefetchScalarGridSpec(
            num_scalar_prefetch=0,
            grid=(M // tM, Vp // tV),
            in_specs=[
                pl.BlockSpec((tM, D), lambda i, j: (i, 0)),
                pl.BlockSpec((D, tV), lambda i, j: (0, j)),
                pl.BlockSpec((1, tV), lambda i, j: (0, j)),
            ],
            out_specs=pl.BlockSpec((tM, tV), lambda i, j: (i, j)),
        ),
        compiler_params=pltpu.CompilerParams(
            dimension_semantics=("parallel", "parallel"),
            vmem_limit_bytes=_VMEM_LIMIT),
    )(x2d, w, b)

    return out.reshape(B, S, Vp)[..., :V]


def transformer_decoder_forward(tokens, all_params, *, num_heads):
    """tokens: (B, S) int32 -> logits (B, S, vocab_size)."""
    D = all_params["tok_emb"].shape[1]
    S = tokens.shape[1]

    # Embedding lookup is gather glue in the wrapper (standard transformer scaling).
    x = all_params["tok_emb"][tokens] * jnp.float32(math.sqrt(D))
    x = x + all_params["pos_emb"][:S][None, :, :]
    x = x.astype(jnp.float32)

    for layer_params in all_params["blocks"]:
        x = run_decoder_block(x, layer_params, num_heads=num_heads)

    return run_output_layer(x, all_params["out_w"], all_params["out_b"])


# ---------------------------------------------------------------------------
# Deterministic parameter construction
# ---------------------------------------------------------------------------

def make_params(key, vocab_size, d_model, max_seq_len, num_heads, ff_hidden_dim, num_layers):
    def nrm(k, shape, scale=0.02, dtype=jnp.bfloat16):
        return (scale * jax.random.normal(k, shape, dtype=jnp.float32)).astype(dtype)

    D, F = d_model, ff_hidden_dim
    keys = jax.random.split(key, 2 + num_layers + 1)
    params = {
        "tok_emb": nrm(keys[0], (vocab_size, d_model), 1.0, jnp.float32),
        "pos_emb": nrm(keys[1], (max_seq_len, d_model), 0.02, jnp.float32),
        "blocks": [],
    }
    for l in range(num_layers):
        lk = jax.random.split(keys[2 + l], 4)
        params["blocks"].append({
            "wqkv": nrm(lk[0], (D, 3 * D)),                       # fused Wq|Wk|Wv, bf16
            "bqkv": jnp.zeros((1, 3 * D), jnp.float32),
            "wo": nrm(lk[1], (D, D)), "bo": jnp.zeros((1, D), jnp.float32),
            "ln1_g": jnp.ones((1, D), jnp.float32),
            "ln1_b": jnp.zeros((1, D), jnp.float32),
            "w1": nrm(lk[2], (D, F)), "b1": jnp.zeros((1, F), jnp.float32),
            "w2": nrm(lk[3], (F, D)), "b2": jnp.zeros((1, D), jnp.float32),
            "ln2_g": jnp.ones((1, D), jnp.float32),
            "ln2_b": jnp.zeros((1, D), jnp.float32),
        })
    params["out_w"] = nrm(keys[-1], (d_model, vocab_size))        # bf16
    params["out_b"] = jnp.zeros((1, vocab_size), jnp.float32)
    return params


# ---------------------------------------------------------------------------

if __name__ == "__main__":
    vocab_size = 50
    d_model = 32
    max_seq_len = 16
    num_heads = 4
    ff_hidden_dim = 64
    num_layers = 2

    batch, seq_len = 2, 8

    key = jax.random.PRNGKey(0)
    pkey, tkey = jax.random.split(key)
    params = make_params(pkey, vocab_size, d_model, max_seq_len,
                         num_heads, ff_hidden_dim, num_layers)
    tokens = jax.random.randint(tkey, (batch, seq_len), 0, vocab_size, dtype=jnp.int32)

    fwd = jax.jit(functools.partial(transformer_decoder_forward, num_heads=num_heads))
    logits = fwd(tokens, params)
    logits = jax.block_until_ready(logits)

    assert logits.shape == (batch, seq_len, vocab_size), logits.shape
    assert bool(jnp.all(jnp.isfinite(logits)))
    print("KERNEL_OK")
</pallas_src>

<mosaic_0001>
module attributes {stable_mosaic.version = 11 : i64} {
  func.func @decoder_block_kernel(%arg0: i32, %arg1: memref<1x8x32xf32, #tpu.memory_space<vmem>>, %arg2: memref<32x96xbf16, #tpu.memory_space<vmem>>, %arg3: memref<1x96xf32, #tpu.memory_space<vmem>>, %arg4: memref<32x32xbf16, #tpu.memory_space<vmem>>, %arg5: memref<1x32xf32, #tpu.memory_space<vmem>>, %arg6: memref<1x32xf32, #tpu.memory_space<vmem>>, %arg7: memref<1x32xf32, #tpu.memory_space<vmem>>, %arg8: memref<32x64xbf16, #tpu.memory_space<vmem>>, %arg9: memref<1x64xf32, #tpu.memory_space<vmem>>, %arg10: memref<64x32xbf16, #tpu.memory_space<vmem>>, %arg11: memref<1x32xf32, #tpu.memory_space<vmem>>, %arg12: memref<1x32xf32, #tpu.memory_space<vmem>>, %arg13: memref<1x32xf32, #tpu.memory_space<vmem>>, %arg14: memref<1x8x32xf32, #tpu.memory_space<vmem>>) attributes {dimension_semantics = [#tpu.dimension_semantics<parallel>], iteration_bounds = array<i64: 2>, scalar_prefetch = 0 : i64, scratch_operands = 0 : i64, tpu.core_type = #tpu.core_type<tc>, window_params = [{transform_indices = @transform_0, window_bounds = array<i64: 1, 8, 32>}, {pipeline_mode = #tpu.pipeline_mode<synchronous>, transform_indices = @transform_1, window_bounds = array<i64: 32, 96>}, {pipeline_mode = #tpu.pipeline_mode<synchronous>, transform_indices = @transform_2, window_bounds = array<i64: 1, 96>}, {pipeline_mode = #tpu.pipeline_mode<synchronous>, transform_indices = @transform_3, window_bounds = array<i64: 32, 32>}, {pipeline_mode = #tpu.pipeline_mode<synchronous>, transform_indices = @transform_4, window_bounds = array<i64: 1, 32>}, {pipeline_mode = #tpu.pipeline_mode<synchronous>, transform_indices = @transform_5, window_bounds = array<i64: 1, 32>}, {pipeline_mode = #tpu.pipeline_mode<synchronous>, transform_indices = @transform_6, window_bounds = array<i64: 1, 32>}, {pipeline_mode = #tpu.pipeline_mode<synchronous>, transform_indices = @transform_7, window_bounds = array<i64: 32, 64>}, {pipeline_mode = #tpu.pipeline_mode<synchronous>, transform_indices = @transform_8, window_bounds = array<i64: 1, 64>}, {pipeline_mode = #tpu.pipeline_mode<synchronous>, transform_indices = @transform_9, window_bounds = array<i64: 64, 32>}, {pipeline_mode = #tpu.pipeline_mode<synchronous>, transform_indices = @transform_10, window_bounds = array<i64: 1, 32>}, {pipeline_mode = #tpu.pipeline_mode<synchronous>, transform_indices = @transform_11, window_bounds = array<i64: 1, 32>}, {pipeline_mode = #tpu.pipeline_mode<synchronous>, transform_indices = @transform_12, window_bounds = array<i64: 1, 32>}, {transform_indices = @transform_13, window_bounds = array<i64: 1, 8, 32>}]} {
    %c0 = arith.constant 0 : index
    %c0_0 = arith.constant 0 : index
    %c0_1 = arith.constant 0 : index
    %0 = vector.load %arg1[%c0, %c0_0, %c0_1] : memref<1x8x32xf32, #tpu.memory_space<vmem>>, vector<1x8x32xf32>
    %1 = vector.shape_cast %0 : vector<1x8x32xf32> to vector<8x32xf32>
    %2 = arith.truncf %1 : vector<8x32xf32> to vector<8x32xbf16>
    %c0_2 = arith.constant 0 : index
    %c0_3 = arith.constant 0 : index
    %3 = vector.load %arg2[%c0_2, %c0_3] : memref<32x96xbf16, #tpu.memory_space<vmem>>, vector<32x96xbf16>
    %cst = arith.constant dense<0.000000e+00> : vector<8x96xf32>
    %4 = tpu.matmul %2, %3, %cst {dimension_numbers = #tpu.dot_dimension_numbers<[1], [0], [0], [1], [0, 0, 1, 1], [], []>} : vector<8x32xbf16>, vector<32x96xbf16>, vector<8x96xf32> -> vector<8x96xf32>
    %c0_4 = arith.constant 0 : index
    %c0_5 = arith.constant 0 : index
    %5 = vector.load %arg3[%c0_4, %c0_5] : memref<1x96xf32, #tpu.memory_space<vmem>>, vector<1x96xf32>
    %6 = vector.broadcast %5 : vector<1x96xf32> to vector<8x96xf32>
    %7 = arith.addf %4, %6 : vector<8x96xf32>
    %8 = vector.extract_strided_slice %7 {offsets = [0, 0], sizes = [8, 32], strides = [1, 1]} : vector<8x96xf32> to vector<8x32xf32>
    %9 = vector.shape_cast %8 : vector<8x32xf32> to vector<8x4x8xf32>
    %10 = tpu.transpose %9, [1, 0, 2] : vector<8x4x8xf32> -> vector<4x8x8xf32>
    %11 = vector.extract_strided_slice %7 {offsets = [0, 32], sizes = [8, 32], strides = [1, 1]} : vector<8x96xf32> to vector<8x32xf32>
    %12 = vector.shape_cast %11 : vector<8x32xf32> to vector<8x4x8xf32>
    %13 = tpu.transpose %12, [1, 0, 2] : vector<8x4x8xf32> -> vector<4x8x8xf32>
    %14 = vector.extract_strided_slice %7 {offsets = [0, 64], sizes = [8, 32], strides = [1, 1]} : vector<8x96xf32> to vector<8x32xf32>
    %15 = vector.shape_cast %14 : vector<8x32xf32> to vector<8x4x8xf32>
    %16 = tpu.transpose %15, [1, 0, 2] : vector<8x4x8xf32> -> vector<4x8x8xf32>
    %cst_6 = arith.constant 0.353553385 : f32
    %17 = vector.broadcast %cst_6 : f32 to vector<4x8x8xf32>
    %18 = arith.mulf %10, %17 : vector<4x8x8xf32>
    %19 = arith.truncf %18 : vector<4x8x8xf32> to vector<4x8x8xbf16>
    %20 = arith.truncf %13 : vector<4x8x8xf32> to vector<4x8x8xbf16>
    "tpu.trace_start"() <{level = 10 : i32, message = "hqd,hkd->hqk"}> : () -> ()
    %cst_7 = arith.constant dense<0.000000e+00> : vector<4x8x8xf32>
    %21 = tpu.matmul %19, %20, %cst_7 {dimension_numbers = #tpu.dot_dimension_numbers<[2], [2], [1], [1], [0, 0, 0, 1, 1, 1], [0], [0]>} : vector<4x8x8xbf16>, vector<4x8x8xbf16>, vector<4x8x8xf32> -> vector<4x8x8xf32>
    "tpu.trace_stop"() : () -> ()
    %22 = tpu.iota {dimensions = array<i32: 0>} : vector<8x8xi32>
    %23 = tpu.iota {dimensions = array<i32: 1>} : vector<8x8xi32>
    %24 = arith.cmpi sle, %23, %22 : vector<8x8xi32>
    %25 = vector.shape_cast %24 : vector<8x8xi1> to vector<1x8x8xi1>
    %cst_8 = arith.constant -1.000000e+30 : f32
    %26 = vector.shape_cast %25 : vector<1x8x8xi1> to vector<1x8x8xi1>
    %27 = vector.broadcast %26 : vector<1x8x8xi1> to vector<4x8x8xi1>
    %28 = vector.broadcast %cst_8 : f32 to vector<4x8x8xf32>
    %29 = arith.select %27, %21, %28 : vector<4x8x8xi1>, vector<4x8x8xf32>
    %cst_9 = arith.constant dense<0xFF800000> : vector<4x8xf32>
    %30 = vector.multi_reduction <maximumf>, %29, %cst_9 [2] : vector<4x8x8xf32> to vector<4x8xf32>
    %31 = vector.shape_cast %30 : vector<4x8xf32> to vector<4x8x1xf32>
    %32 = vector.broadcast %31 : vector<4x8x1xf32> to vector<4x8x8xf32>
    %33 = arith.subf %29, %32 : vector<4x8x8xf32>
    %34 = math.exp %33 : vector<4x8x8xf32>
    %cst_10 = arith.constant dense<0.000000e+00> : vector<4x8xf32>
    %35 = vector.multi_reduction <add>, %34, %cst_10 [2] : vector<4x8x8xf32> to vector<4x8xf32>
    %36 = vector.shape_cast %35 : vector<4x8xf32> to vector<4x8x1xf32>
    %37 = tpu.reciprocal %36 {approx = true} : vector<4x8x1xf32> -> vector<4x8x1xf32>
    %38 = vector.broadcast %37 : vector<4x8x1xf32> to vector<4x8x8xf32>
    %39 = arith.mulf %34, %38 : vector<4x8x8xf32>
    %40 = arith.truncf %39 : vector<4x8x8xf32> to vector<4x8x8xbf16>
    %41 = arith.truncf %16 : vector<4x8x8xf32> to vector<4x8x8xbf16>
    "tpu.trace_start"() <{level = 10 : i32, message = "hqk,hkd->hqd"}> : () -> ()
    %cst_11 = arith.constant dense<0.000000e+00> : vector<4x8x8xf32>
    %42 = tpu.matmul %40, %41, %cst_11 {dimension_numbers = #tpu.dot_dimension_numbers<[2], [1], [1], [2], [0, 0, 0, 1, 1, 2], [0], [0]>} : vector<4x8x8xbf16>, vector<4x8x8xbf16>, vector<4x8x8xf32> -> vector<4x8x8xf32>
    "tpu.trace_stop"() : () -> ()
    %43 = tpu.transpose %42, [1, 0, 2] : vector<4x8x8xf32> -> vector<8x4x8xf32>
    %44 = vector.shape_cast %43 : vector<8x4x8xf32> to vector<8x32xf32>
    %45 = arith.truncf %44 : vector<8x32xf32> to vector<8x32xbf16>
    %c0_12 = arith.constant 0 : index
    %c0_13 = arith.constant 0 : index
    %46 = vector.load %arg4[%c0_12, %c0_13] : memref<32x32xbf16, #tpu.memory_space<vmem>>, vector<32x32xbf16>
    %cst_14 = arith.constant dense<0.000000e+00> : vector<8x32xf32>
    %47 = tpu.matmul %45, %46, %cst_14 {dimension_numbers = #tpu.dot_dimension_numbers<[1], [0], [0], [1], [0, 0, 1, 1], [], []>} : vector<8x32xbf16>, vector<32x32xbf16>, vector<8x32xf32> -> vector<8x32xf32>
    %c0_15 = arith.constant 0 : index
    %c0_16 = arith.constant 0 : index
    %48 = vector.load %arg5[%c0_15, %c0_16] : memref<1x32xf32, #tpu.memory_space<vmem>>, vector<1x32xf32>
    %49 = vector.broadcast %48 : vector<1x32xf32> to vector<8x32xf32>
    %50 = arith.addf %47, %49 : vector<8x32xf32>
    %51 = arith.addf %1, %50 : vector<8x32xf32>
    %cst_17 = arith.constant dense<0.000000e+00> : vector<8xf32>
    %52 = vector.multi_reduction <add>, %51, %cst_17 [1] : vector<8x32xf32> to vector<8xf32>
    %53 = vector.shape_cast %52 : vector<8xf32> to vector<8x1xf32>
    %cst_18 = arith.constant 3.200000e+01 : f32
    %54 = vector.broadcast %cst_18 : f32 to vector<8x1xf32>
    %55 = arith.divf %53, %54 : vector<8x1xf32>
    %56 = vector.broadcast %55 : vector<8x1xf32> to vector<8x32xf32>
    %57 = arith.subf %51, %56 : vector<8x32xf32>
    %58 = arith.mulf %57, %57 : vector<8x32xf32>
    %cst_19 = arith.constant dense<0.000000e+00> : vector<8xf32>
    %59 = vector.multi_reduction <add>, %58, %cst_19 [1] : vector<8x32xf32> to vector<8xf32>
    %60 = vector.shape_cast %59 : vector<8xf32> to vector<8x1xf32>
    %cst_20 = arith.constant 3.200000e+01 : f32
    %61 = vector.broadcast %cst_20 : f32 to vector<8x1xf32>
    %62 = arith.divf %60, %61 : vector<8x1xf32>
    %63 = vector.broadcast %55 : vector<8x1xf32> to vector<8x32xf32>
    %64 = arith.subf %51, %63 : vector<8x32xf32>
    %cst_21 = arith.constant 9.99999974E-6 : f32
    %65 = vector.broadcast %cst_21 : f32 to vector<8x1xf32>
    %66 = arith.addf %62, %65 : vector<8x1xf32>
    %67 = math.rsqrt %66 : vector<8x1xf32>
    %68 = vector.broadcast %67 : vector<8x1xf32> to vector<8x32xf32>
    %69 = arith.mulf %64, %68 : vector<8x32xf32>
    %c0_22 = arith.constant 0 : index
    %c0_23 = arith.constant 0 : index
    %70 = vector.load %arg6[%c0_22, %c0_23] : memref<1x32xf32, #tpu.memory_space<vmem>>, vector<1x32xf32>
    %71 = vector.broadcast %70 : vector<1x32xf32> to vector<8x32xf32>
    %72 = arith.mulf %69, %71 : vector<8x32xf32>
    %c0_24 = arith.constant 0 : index
    %c0_25 = arith.constant 0 : index
    %73 = vector.load %arg7[%c0_24, %c0_25] : memref<1x32xf32, #tpu.memory_space<vmem>>, vector<1x32xf32>
    %74 = vector.broadcast %73 : vector<1x32xf32> to vector<8x32xf32>
    %75 = arith.addf %72, %74 : vector<8x32xf32>
    %76 = arith.truncf %75 : vector<8x32xf32> to vector<8x32xbf16>
    %c0_26 = arith.constant 0 : index
    %c0_27 = arith.constant 0 : index
    %77 = vector.load %arg8[%c0_26, %c0_27] : memref<32x64xbf16, #tpu.memory_space<vmem>>, vector<32x64xbf16>
    %cst_28 = arith.constant dense<0.000000e+00> : vector<8x64xf32>
    %78 = tpu.matmul %76, %77, %cst_28 {dimension_numbers = #tpu.dot_dimension_numbers<[1], [0], [0], [1], [0, 0, 1, 1], [], []>} : vector<8x32xbf16>, vector<32x64xbf16>, vector<8x64xf32> -> vector<8x64xf32>
    %c0_29 = arith.constant 0 : index
    %c0_30 = arith.constant 0 : index
    %79 = vector.load %arg9[%c0_29, %c0_30] : memref<1x64xf32, #tpu.memory_space<vmem>>, vector<1x64xf32>
    %80 = vector.broadcast %79 : vector<1x64xf32> to vector<8x64xf32>
    %81 = arith.addf %78, %80 : vector<8x64xf32>
    %cst_31 = arith.constant 0.000000e+00 : f32
    %82 = vector.broadcast %cst_31 : f32 to vector<8x64xf32>
    %83 = arith.maximumf %81, %82 : vector<8x64xf32>
    %84 = arith.truncf %83 : vector<8x64xf32> to vector<8x64xbf16>
    %c0_32 = arith.constant 0 : index
    %c0_33 = arith.constant 0 : index
    %85 = vector.load %arg10[%c0_32, %c0_33] : memref<64x32xbf16, #tpu.memory_space<vmem>>, vector<64x32xbf16>
    %cst_34 = arith.constant dense<0.000000e+00> : vector<8x32xf32>
    %86 = tpu.matmul %84, %85, %cst_34 {dimension_numbers = #tpu.dot_dimension_numbers<[1], [0], [0], [1], [0, 0, 1, 1], [], []>} : vector<8x64xbf16>, vector<64x32xbf16>, vector<8x32xf32> -> vector<8x32xf32>
    %c0_35 = arith.constant 0 : index
    %c0_36 = arith.constant 0 : index
    %87 = vector.load %arg11[%c0_35, %c0_36] : memref<1x32xf32, #tpu.memory_space<vmem>>, vector<1x32xf32>
    %88 = vector.broadcast %87 : vector<1x32xf32> to vector<8x32xf32>
    %89 = arith.addf %86, %88 : vector<8x32xf32>
    %90 = arith.addf %75, %89 : vector<8x32xf32>
    %cst_37 = arith.constant dense<0.000000e+00> : vector<8xf32>
    %91 = vector.multi_reduction <add>, %90, %cst_37 [1] : vector<8x32xf32> to vector<8xf32>
    %92 = vector.shape_cast %91 : vector<8xf32> to vector<8x1xf32>
    %cst_38 = arith.constant 3.200000e+01 : f32
    %93 = vector.broadcast %cst_38 : f32 to vector<8x1xf32>
    %94 = arith.divf %92, %93 : vector<8x1xf32>
    %95 = vector.broadcast %94 : vector<8x1xf32> to vector<8x32xf32>
    %96 = arith.subf %90, %95 : vector<8x32xf32>
    %97 = arith.mulf %96, %96 : vector<8x32xf32>
    %cst_39 = arith.constant dense<0.000000e+00> : vector<8xf32>
    %98 = vector.multi_reduction <add>, %97, %cst_39 [1] : vector<8x32xf32> to vector<8xf32>
    %99 = vector.shape_cast %98 : vector<8xf32> to vector<8x1xf32>
    %cst_40 = arith.constant 3.200000e+01 : f32
    %100 = vector.broadcast %cst_40 : f32 to vector<8x1xf32>
    %101 = arith.divf %99, %100 : vector<8x1xf32>
    %102 = vector.broadcast %94 : vector<8x1xf32> to vector<8x32xf32>
    %103 = arith.subf %90, %102 : vector<8x32xf32>
    %cst_41 = arith.constant 9.99999974E-6 : f32
    %104 = vector.broadcast %cst_41 : f32 to vector<8x1xf32>
    %105 = arith.addf %101, %104 : vector<8x1xf32>
    %106 = math.rsqrt %105 : vector<8x1xf32>
    %107 = vector.broadcast %106 : vector<8x1xf32> to vector<8x32xf32>
    %108 = arith.mulf %103, %107 : vector<8x32xf32>
    %c0_42 = arith.constant 0 : index
    %c0_43 = arith.constant 0 : index
    %109 = vector.load %arg12[%c0_42, %c0_43] : memref<1x32xf32, #tpu.memory_space<vmem>>, vector<1x32xf32>
    %110 = vector.broadcast %109 : vector<1x32xf32> to vector<8x32xf32>
    %111 = arith.mulf %108, %110 : vector<8x32xf32>
    %c0_44 = arith.constant 0 : index
    %c0_45 = arith.constant 0 : index
    %112 = vector.load %arg13[%c0_44, %c0_45] : memref<1x32xf32, #tpu.memory_space<vmem>>, vector<1x32xf32>
    %113 = vector.broadcast %112 : vector<1x32xf32> to vector<8x32xf32>
    %114 = arith.addf %111, %113 : vector<8x32xf32>
    %c0_46 = arith.constant 0 : index
    %c0_47 = arith.constant 0 : index
    %c0_48 = arith.constant 0 : index
    %115 = vector.load %arg14[%c0_46, %c0_47, %c0_48] : memref<1x8x32xf32, #tpu.memory_space<vmem>>, vector<1x8x32xf32>
    %116 = vector.shape_cast %115 : vector<1x8x32xf32> to vector<8x32xf32>
    %117 = vector.shape_cast %114 : vector<8x32xf32> to vector<1x8x32xf32>
    tpu.vector_store %arg14[%c0_46, %c0_47, %c0_48], %117 {strides = array<i32>} : memref<1x8x32xf32, #tpu.memory_space<vmem>>, vector<1x8x32xf32>,
    return
  }
  func.func @transform_0(%arg0: i32) -> (i32, i32, i32) {
    %c0_i32 = arith.constant 0 : i32
    %c0_i32_0 = arith.constant 0 : i32
    %c0_i32_1 = arith.constant 0 : i32
    return %arg0, %c0_i32, %c0_i32_0 : i32, i32, i32
  }
  func.func @transform_1(%arg0: i32) -> (i32, i32) {
    %c0_i32 = arith.constant 0 : i32
    %c0_i32_0 = arith.constant 0 : i32
    %c0_i32_1 = arith.constant 0 : i32
    return %c0_i32, %c0_i32_0 : i32, i32
  }
  func.func @transform_2(%arg0: i32) -> (i32, i32) {
    %c0_i32 = arith.constant 0 : i32
    %c0_i32_0 = arith.constant 0 : i32
    %c0_i32_1 = arith.constant 0 : i32
    return %c0_i32, %c0_i32_0 : i32, i32
  }
  func.func @transform_3(%arg0: i32) -> (i32, i32) {
    %c0_i32 = arith.constant 0 : i32
    %c0_i32_0 = arith.constant 0 : i32
    %c0_i32_1 = arith.constant 0 : i32
    return %c0_i32, %c0_i32_0 : i32, i32
  }
  func.func @transform_4(%arg0: i32) -> (i32, i32) {
    %c0_i32 = arith.constant 0 : i32
    %c0_i32_0 = arith.constant 0 : i32
    %c0_i32_1 = arith.constant 0 : i32
    return %c0_i32, %c0_i32_0 : i32, i32
  }
  func.func @transform_5(%arg0: i32) -> (i32, i32) {
    %c0_i32 = arith.constant 0 : i32
    %c0_i32_0 = arith.constant 0 : i32
    %c0_i32_1 = arith.constant 0 : i32
    return %c0_i32, %c0_i32_0 : i32, i32
  }
  func.func @transform_6(%arg0: i32) -> (i32, i32) {
    %c0_i32 = arith.constant 0 : i32
    %c0_i32_0 = arith.constant 0 : i32
    %c0_i32_1 = arith.constant 0 : i32
    return %c0_i32, %c0_i32_0 : i32, i32
  }
  func.func @transform_7(%arg0: i32) -> (i32, i32) {
    %c0_i32 = arith.constant 0 : i32
    %c0_i32_0 = arith.constant 0 : i32
    %c0_i32_1 = arith.constant 0 : i32
    return %c0_i32, %c0_i32_0 : i32, i32
  }
  func.func @transform_8(%arg0: i32) -> (i32, i32) {
    %c0_i32 = arith.constant 0 : i32
    %c0_i32_0 = arith.constant 0 : i32
    %c0_i32_1 = arith.constant 0 : i32
    return %c0_i32, %c0_i32_0 : i32, i32
  }
  func.func @transform_9(%arg0: i32) -> (i32, i32) {
    %c0_i32 = arith.constant 0 : i32
    %c0_i32_0 = arith.constant 0 : i32
    %c0_i32_1 = arith.constant 0 : i32
    return %c0_i32, %c0_i32_0 : i32, i32
  }
  func.func @transform_10(%arg0: i32) -> (i32, i32) {
    %c0_i32 = arith.constant 0 : i32
    %c0_i32_0 = arith.constant 0 : i32
    %c0_i32_1 = arith.constant 0 : i32
    return %c0_i32, %c0_i32_0 : i32, i32
  }
  func.func @transform_11(%arg0: i32) -> (i32, i32) {
    %c0_i32 = arith.constant 0 : i32
    %c0_i32_0 = arith.constant 0 : i32
    %c0_i32_1 = arith.constant 0 : i32
    return %c0_i32, %c0_i32_0 : i32, i32
  }
  func.func @transform_12(%arg0: i32) -> (i32, i32) {
    %c0_i32 = arith.constant 0 : i32
    %c0_i32_0 = arith.constant 0 : i32
    %c0_i32_1 = arith.constant 0 : i32
    return %c0_i32, %c0_i32_0 : i32, i32
  }
  func.func @transform_13(%arg0: i32) -> (i32, i32, i32) {
    %c0_i32 = arith.constant 0 : i32
    %c0_i32_0 = arith.constant 0 : i32
    %c0_i32_1 = arith.constant 0 : i32
    return %arg0, %c0_i32, %c0_i32_0 : i32, i32, i32
  }
}

module attributes {stable_mosaic.version = 11 : i64} {
  func.func @output_linear_kernel(%arg0: i32, %arg1: i32, %arg2: memref<8x32xf32, #tpu.memory_space<vmem>>, %arg3: memref<32x128xbf16, #tpu.memory_space<vmem>>, %arg4: memref<1x128xf32, #tpu.memory_space<vmem>>, %arg5: memref<8x128xf32, #tpu.memory_space<vmem>>) attributes {dimension_semantics = [#tpu.dimension_semantics<parallel>, #tpu.dimension_semantics<parallel>], iteration_bounds = array<i64: 2, 1>, scalar_prefetch = 0 : i64, scratch_operands = 0 : i64, tpu.core_type = #tpu.core_type<tc>, window_params = [{transform_indices = @transform_0, window_bounds = array<i64: 8, 32>}, {transform_indices = @transform_1, window_bounds = array<i64: 32, 128>}, {transform_indices = @transform_2, window_bounds = array<i64: 1, 128>}, {transform_indices = @transform_3, window_bounds = array<i64: 8, 128>}]} {
    %c0 = arith.constant 0 : index
    %c0_0 = arith.constant 0 : index
    %0 = vector.load %arg2[%c0, %c0_0] : memref<8x32xf32, #tpu.memory_space<vmem>>, vector<8x32xf32>
    %1 = arith.truncf %0 : vector<8x32xf32> to vector<8x32xbf16>
    %c0_1 = arith.constant 0 : index
    %c0_2 = arith.constant 0 : index
    %2 = vector.load %arg3[%c0_1, %c0_2] : memref<32x128xbf16, #tpu.memory_space<vmem>>, vector<32x128xbf16>
    %cst = arith.constant dense<0.000000e+00> : vector<8x128xf32>
    %3 = tpu.matmul %1, %2, %cst {dimension_numbers = #tpu.dot_dimension_numbers<[1], [0], [0], [1], [0, 0, 1, 1], [], []>} : vector<8x32xbf16>, vector<32x128xbf16>, vector<8x128xf32> -> vector<8x128xf32>
    %c0_3 = arith.constant 0 : index
    %c0_4 = arith.constant 0 : index
    %4 = vector.load %arg4[%c0_3, %c0_4] : memref<1x128xf32, #tpu.memory_space<vmem>>, vector<1x128xf32>
    %5 = vector.broadcast %4 : vector<1x128xf32> to vector<8x128xf32>
    %6 = arith.addf %3, %5 : vector<8x128xf32>
    %c0_5 = arith.constant 0 : index
    %c0_6 = arith.constant 0 : index
    %7 = vector.load %arg5[%c0_5, %c0_6] : memref<8x128xf32, #tpu.memory_space<vmem>>, vector<8x128xf32>
    tpu.vector_store %arg5[%c0_5, %c0_6], %6 {strides = array<i32>} : memref<8x128xf32, #tpu.memory_space<vmem>>, vector<8x128xf32>,
    return
  }
  func.func @transform_0(%arg0: i32, %arg1: i32) -> (i32, i32) {
    %c0_i32 = arith.constant 0 : i32
    %c0_i32_0 = arith.constant 0 : i32
    return %arg0, %c0_i32 : i32, i32
  }
  func.func @transform_1(%arg0: i32, %arg1: i32) -> (i32, i32) {
    %c0_i32 = arith.constant 0 : i32
    %c0_i32_0 = arith.constant 0 : i32
    return %c0_i32, %arg1 : i32, i32
  }
  func.func @transform_2(%arg0: i32, %arg1: i32) -> (i32, i32) {
    %c0_i32 = arith.constant 0 : i32
    %c0_i32_0 = arith.constant 0 : i32
    return %c0_i32, %arg1 : i32, i32
  }
  func.func @transform_3(%arg0: i32, %arg1: i32) -> (i32, i32) {
    %c0_i32 = arith.constant 0 : i32
    return %arg0, %arg1 : i32, i32
  }
}

</mosaic_0001>

<llo_original>
// kernel: transformer_decoder_forward.5
$region0: #{transformer_decoder_forward.5}
  #allocation0 [shape = 'u32[]', space=smem, size = 0x4, offset = 0x4, fixed_abs, tag = 'smem constant byte address 0x4 - core index']
  #allocation1 [shape = 'u32[72,128]{1,0:T(1,128)}', space=vmem, size = 0x9000, scoped, tag = 'internal scratch']
  %s0 = inlined_call_operand.vmem [shape: f32[16,32], index: 0, kind: input, shape index: {}]
  %s1 = inlined_call_operand.vmem [shape: bf16[32,128], index: 1, kind: input, shape index: {}]
  %s2 = inlined_call_operand.vmem [shape: f32[1,128], index: 2, kind: input, shape index: {}]
  %s3 = inlined_call_operand.hbm [shape: f32[16,128], index: 3, kind: output, shape index: {}]
  %s4 = sld [smem:[#allocation0]]
  $region45: #{transformer_decoder_forward.5} parent=0
    _
  %s6 = ssub.s32 1, %s4
  %s7 = scalar_select 0, %s6, %s4
  $region1: #{transformer_decoder_forward.5} parent=0
    #allocation2 [shape = 'u8[8192]{0}', space=vmem, size = 0x2000, scoped, tag = 'output window, operand 0']
    #allocation3 [shape = 's32[2]{0}', space=sflag, size = 0x8, scoped, tag = 'scoped memory for transformer_decoder_forward.5']
    %8 = vsyncpa [#allocation3], 0
    %s9 = scalar_lea.sflag [#allocation3], 1
    %10 = vsyncpa %s9, 0
    loop: start=0, step=1, limit=4
    $region2: #{transformer_decoder_forward.5} parent=1 // loop_pre_header
      _
    $region3: #{transformer_decoder_forward.5} parent=1 // loop_header
      %s12 = sphi 0, %s16
      %p13 = scmp.ge.s32.totalorder %s12, 4
      %s19 = sphi 0, %s31
      %s20 = sphi 0, %s27
      %s21 = sphi 0, %s19
      %s22 = sphi 0, %s20
      %s23 = sphi 0, %s21
      %s24 = sphi 0, %s22
      %s34 = sphi 0, %s36
      %s37 = sphi 0, %s34
      %s38 = sphi 0, %s37
      %s54 = sphi 0, %s38
      %s60 = sphi 0, %s62
      %s63 = sphi 0, %s60
      %s64 = sphi 0, %s63
      %s80 = sphi 0, %s64
      %s86 = sphi 0, %s88
      %s89 = sphi 0, %s86
      %s90 = sphi 0, %s89
      %s106 = sphi 0, %s90
      %s114 = sphi 0, %s116
      %s117 = sphi 0, %s114
      %s118 = sphi 0, %s117
      %s134 = sphi 0, %s118
    $region4: #{transformer_decoder_forward.5} parent=1 // loop_header_branch
      %15 = sbr.rel (%p13) target = $region8
    $region5: #{transformer_decoder_forward.5} parent=1 // loop_body
      %s17 = ssub.s32 %s12, 1
      %s18 = ssub.s32 %s12, 2
      %s25 = sadd.s32 1, %s20
      %p26 = scmp.ge.s32.totalorder %s25, 1
      %s27 = scalar_select %p26, 0, %s25
      %s28 = sadd.s32 1, %s19
      %s29 = scalar_select %p26, %s28, %s19
      %p30 = scmp.ge.s32.totalorder %s29, 2
      %s31 = scalar_select %p30, 0, %s29
      %s32 = ssub.s32 %s19, %s31
      %p33 = scmp.eq.s32.totalorder %s32, 0
      %s35 = sadd.s32 %s34, 1
      %s36 = scalar_select %p33, %s34, %s35
      %p39 = pneg %p33
      %p40 = scmp.eq.s32.totalorder %s12, 1
      %p41 = por %p39, %p40
      %p42 = scmp.ne.s32.totalorder %s34, %s37
      %p43 = scmp.eq.s32.totalorder %s12, 0
      %p44 = por %p42, %p43
      %p45 = scmp.ne.s32.totalorder %s34, %s37
      %p46 = scmp.eq.s32.totalorder %s17, 1
      %p47 = por %p45, %p46
      %p48 = scmp.ne.s32.totalorder %s37, %s38
      %p49 = scmp.eq.s32.totalorder %s17, 0
      %p50 = por %p48, %p49
      %p51 = scmp.ne.s32.totalorder %s37, %s38
      %p52 = scmp.eq.s32.totalorder %s18, 1
      %p53 = por %p51, %p52
      %p55 = scmp.ne.s32.totalorder %s38, %s54
      %p56 = scmp.eq.s32.totalorder %s18, 0
      %p57 = por %p55, %p56
      %s58 = ssub.s32 %s20, %s27
      %p59 = scmp.eq.s32.totalorder %s58, 0
      %s61 = sadd.s32 %s60, 1
      %s62 = scalar_select %p59, %s60, %s61
      %p65 = pneg %p59
      %p66 = scmp.eq.s32.totalorder %s12, 1
      %p67 = por %p65, %p66
      %p68 = scmp.ne.s32.totalorder %s60, %s63
      %p69 = scmp.eq.s32.totalorder %s12, 0
      %p70 = por %p68, %p69
      %p71 = scmp.ne.s32.totalorder %s60, %s63
      %p72 = scmp.eq.s32.totalorder %s17, 1
      %p73 = por %p71, %p72
      %p74 = scmp.ne.s32.totalorder %s63, %s64
      %p75 = scmp.eq.s32.totalorder %s17, 0
      %p76 = por %p74, %p75
      %p77 = scmp.ne.s32.totalorder %s63, %s64
      %p78 = scmp.eq.s32.totalorder %s18, 1
      %p79 = por %p77, %p78
      %p81 = scmp.ne.s32.totalorder %s64, %s80
      %p82 = scmp.eq.s32.totalorder %s18, 0
      %p83 = por %p81, %p82
      %s84 = ssub.s32 %s20, %s27
      %p85 = scmp.eq.s32.totalorder %s84, 0
      %s87 = sadd.s32 %s86, 1
      %s88 = scalar_select %p85, %s86, %s87
      %p91 = pneg %p85
      %p92 = scmp.eq.s32.totalorder %s12, 1
      %p93 = por %p91, %p92
      %p94 = scmp.ne.s32.totalorder %s86, %s89
      %p95 = scmp.eq.s32.totalorder %s12, 0
      %p96 = por %p94, %p95
      %p97 = scmp.ne.s32.totalorder %s86, %s89
      %p98 = scmp.eq.s32.totalorder %s17, 1
      %p99 = por %p97, %p98
      %p100 = scmp.ne.s32.totalorder %s89, %s90
      %p101 = scmp.eq.s32.totalorder %s17, 0
      %p102 = por %p100, %p101
      %p103 = scmp.ne.s32.totalorder %s89, %s90
      %p104 = scmp.eq.s32.totalorder %s18, 1
      %p105 = por %p103, %p104
      %p107 = scmp.ne.s32.totalorder %s90, %s106
      %p108 = scmp.eq.s32.totalorder %s18, 0
      %p109 = por %p107, %p108
      %s110 = ssub.s32 %s19, %s31
      %s111 = ssub.s32 %s20, %s27
      %s112 = sor.u32 %s110, %s111
      %p113 = scmp.eq.s32.totalorder %s112, 0
      %s115 = sadd.s32 %s114, 1
      %s116 = scalar_select %p113, %s114, %s115
      %p119 = pneg %p113
      %p120 = scmp.eq.s32.totalorder %s12, 1
      %p121 = por %p119, %p120
      %p122 = scmp.ne.s32.totalorder %s114, %s117
      %p123 = scmp.eq.s32.totalorder %s12, 0
      %p124 = por %p122, %p123
      %p125 = scmp.ne.s32.totalorder %s114, %s117
      %p126 = scmp.eq.s32.totalorder %s17, 1
      %p127 = por %p125, %p126
      %p128 = scmp.ne.s32.totalorder %s117, %s118
      %p129 = scmp.eq.s32.totalorder %s17, 0
      %p130 = por %p128, %p129
      %p131 = scmp.ne.s32.totalorder %s117, %s118
      %p132 = scmp.eq.s32.totalorder %s18, 1
      %p133 = por %p131, %p132
      %p135 = scmp.ne.s32.totalorder %s118, %s134
      %p136 = scmp.eq.s32.totalorder %s18, 0
      %p137 = por %p135, %p136
      %p138 = scmp.le.s32.totalorder 1, %s12
      %p139 = scmp.lt.s32.totalorder %s12, 3
      %p140 = pnand %p138, %p139
      %p141 = pneg %p140
      // Predicated region
      $region9: #{transformer_decoder_forward.5} parent=5 // pred_check
        _
      $region10: #{transformer_decoder_forward.5} parent=5 // pred_check_branch
        %143 = sbr.rel (%p140) target = $region12
      $region11: #{transformer_decoder_forward.5} parent=5 // pred_region
        %s144 = ssub.s32 %s12, 1
        // Predicated region
        $region13: #{transformer_decoder_forward.5} parent=11 // pred_check
          %p145 = pneg %p76
        $region14: #{transformer_decoder_forward.5} parent=11 // pred_check_branch
          %147 = sbr.rel (%p145) target = $region16
        $region15: #{transformer_decoder_forward.5} parent=11 // pred_region
          %p148 = scmp.lt.s32.totalorder %s22, 0
          %s149 = scalar_select %p148, %s22, 0
          %s150 = smul.addr %s149, 4
          %s151 = scalar_lea.vmem %s1, %s150
        $region16: #{transformer_decoder_forward.5} parent=11 // pred_fallthru
          _
        // Predicated region
        $region17: #{transformer_decoder_forward.5} parent=11 // pred_check
          %p152 = pneg %p102
        $region18: #{transformer_decoder_forward.5} parent=11 // pred_check_branch
          %154 = sbr.rel (%p152) target = $region20
        $region19: #{transformer_decoder_forward.5} parent=11 // pred_region
          %p155 = scmp.lt.s32.totalorder %s22, 0
          %s156 = scalar_select %p155, %s22, 0
          %s157 = scalar_lea.vmem %s2, %s156
        $region20: #{transformer_decoder_forward.5} parent=11 // pred_fallthru
          _
      $region12: #{transformer_decoder_forward.5} parent=5 // pred_fallthru
        _
      %p158 = scmp.lt.s32.totalorder %s12, 2
      // Predicated region
      $region21: #{transformer_decoder_forward.5} parent=5 // pred_check
        %p159 = pneg %p158
      $region22: #{transformer_decoder_forward.5} parent=5 // pred_check_branch
        %161 = sbr.rel (%p159) target = $region24
      $region23: #{transformer_decoder_forward.5} parent=5 // pred_region
        // Predicated region
        $region25: #{transformer_decoder_forward.5} parent=23 // pred_check
          %p162 = pneg %p44
        $region26: #{transformer_decoder_forward.5} parent=23 // pred_check_branch
          %164 = sbr.rel (%p162) target = $region28
        $region27: #{transformer_decoder_forward.5} parent=23 // pred_region
          %p165 = scmp.lt.s32.totalorder %s19, 1
          %s166 = scalar_select %p165, %s19, 1
          %s167 = smul.addr %s166, 8
          %s168 = scalar_lea.vmem %s0, %s167
        $region28: #{transformer_decoder_forward.5} parent=23 // pred_fallthru
          _
      $region24: #{transformer_decoder_forward.5} parent=5 // pred_fallthru
        _
      %p169 = scmp.le.s32.totalorder 1, %s12
      %p170 = scmp.lt.s32.totalorder %s12, 3
      %p171 = pnand %p169, %p170
      %p172 = pneg %p171
      // Predicated region
      $region29: #{transformer_decoder_forward.5} parent=5 // pred_check
        _
      $region30: #{transformer_decoder_forward.5} parent=5 // pred_check_branch
        %174 = sbr.rel (%p171) target = $region32
      $region31: #{transformer_decoder_forward.5} parent=5 // pred_region
        %s175 = ssub.s32 %s12, 1
        %p176 = scmp.lt.s32.totalorder %s21, 1
        %s177 = scalar_select %p176, %s21, 1
        %s178 = smul.addr %s177, 8
        %s179 = scalar_lea.vmem %s0, %s178
        %p180 = pneg %p50
        %p181 = pneg %p47
        %p182 = scmp.lt.s32.totalorder %s22, 0
        %s183 = scalar_select %p182, %s22, 0
        %s184 = smul.addr %s183, 4
        %s185 = scalar_lea.vmem %s1, %s184
        %p186 = pneg %p76
        %p187 = pneg %p73
        %p188 = scmp.lt.s32.totalorder %s22, 0
        %s189 = scalar_select %p188, %s22, 0
        %s190 = scalar_lea.vmem %s2, %s189
        %p191 = pneg %p102
        %p192 = pneg %p99
        %p193 = pneg %p130
        %p194 = pneg %p127
        %s195 = sand.u32 %s117, 1
        %s196 = scalar_lea.sflag [#allocation3], %s195
        %s197 = sand.u32 %s117, 1
        %s198 = smul.addr %s197, 8
        %s199 = scalar_lea.vmem [#allocation2], %s198
        %p200 = scmp.lt.s32.totalorder %s21, 1
        %s201 = scalar_select %p200, %s21, 1
        %s202 = smul.addr %s201, 8
        %s203 = scalar_lea.vmem %s0, %s202
        %p204 = scmp.lt.s32.totalorder %s22, 0
        %s205 = scalar_select %p204, %s22, 0
        %s206 = smul.addr %s205, 4
        %s207 = scalar_lea.vmem %s1, %s206
        %p208 = scmp.lt.s32.totalorder %s22, 0
        %s209 = scalar_select %p208, %s22, 0
        %s210 = scalar_lea.vmem %s2, %s209
        %v212 = vld [vmem:[%s203] sm:$0xff]
        %v213 = vpack.c.bf16 %v212, %v212
        %v214 = vld [vmem:[%s207] sm:$0xf]
        %v215 = vld [vmem:[%s207 + $0x4] sm:$0xf]
        %v216 = vld [vmem:[%s207 + $0x8] sm:$0xf]
        %v217 = vld [vmem:[%s207 + $0xc] sm:$0xf]
        %v218 = vld [vmem:[%s210] sm:$0x1]
        %v220 = vperm.slane %v218, 0
        %v226 = vunpack.c.l.b16 %v214
        %v227 = vunpack.c.l.b16 %v215
        %v228 = vunpack.c.l.b16 %v216
        %v229 = vunpack.c.l.b16 %v217
        %v230 = vpack.c.b16 %v227, %v226
        %v231 = vpack.c.b16 %v229, %v228
        %vm234 = vcmask 261120
        %v236 = vsel %vm234, %v213, 0
        %238 = vmatpush.bf16.msra.mxu0 0
        %239 = vmatpush.bf16.msra.mxu0 0
        %240 = vmatpush.bf16.msra.mxu0 0
        %241 = vmatpush.bf16.msra.mxu0 0
        %242 = vmatpush.bf16.msra.mxu0 0
        %243 = vmatpush.bf16.msra.mxu0 0
        %244 = vmatpush.bf16.msra.mxu0 %v231
        %245 = vmatpush.bf16.msra.mxu0 %v230
        %246 = vmatmul.bf16.gmra.mxu0 %v236
        %v247 = vpop.f32.mrf.mxu0
        %v248 = vadd.f32 %v220, %v247
        %v249 = vpop.f32.mrf.mxu0
        %250 = vdwg.mxu0
        %251 = vst [vmem:[%s199] sm:$0xff] %v248
        %s252 = sand.u32 %s117, 1
        %s253 = scalar_lea.sflag [#allocation3], %s252
        %s254 = sand.u32 %s117, 1
        %s255 = smul.addr %s254, 8
        %s256 = scalar_lea.vmem [#allocation2], %s255
        // Predicated region
        $region33: #{transformer_decoder_forward.5} parent=31 // pred_check
          %p257 = pneg %p127
        $region34: #{transformer_decoder_forward.5} parent=31 // pred_check_branch
          %259 = sbr.rel (%p257) target = $region36
        $region35: #{transformer_decoder_forward.5} parent=31 // pred_region
          %261 = vsyncadd %s253, 0
          %s262 = sadd.s32 %s22, %s21
          %s263 = smul.addr %s262, 8
          %s264 = scalar_lea.hbm %s3, %s263
          %s266 = sshll.u32 %s256, 4
          %s267 = int_to_ptr.vmem [resolvable:$true] %s266
          %s268 = sshll.u32 %s264, 4
          %s269 = int_to_ptr.hbm [resolvable:$true] %s268
          %271 = dma.vmem_to_hbm [thread:$0]  %s267, 128, %s269, %s253
        $region36: #{transformer_decoder_forward.5} parent=31 // pred_fallthru
          _
      $region32: #{transformer_decoder_forward.5} parent=5 // pred_fallthru
        _
      %p272 = scmp.le.s32.totalorder 2, %s12
      // Predicated region
      $region37: #{transformer_decoder_forward.5} parent=5 // pred_check
        %p273 = pneg %p272
      $region38: #{transformer_decoder_forward.5} parent=5 // pred_check_branch
        %275 = sbr.rel (%p273) target = $region40
      $region39: #{transformer_decoder_forward.5} parent=5 // pred_region
        %s276 = ssub.s32 %s12, 2
        // Predicated region
        $region41: #{transformer_decoder_forward.5} parent=39 // pred_check
          %p277 = pneg %p133
        $region42: #{transformer_decoder_forward.5} parent=39 // pred_check_branch
          %279 = sbr.rel (%p277) target = $region44
        $region43: #{transformer_decoder_forward.5} parent=39 // pred_region
          %s280 = sand.u32 %s118, 1
          %s281 = scalar_lea.sflag [#allocation3], %s280
          %s282 = sand.u32 %s118, 1
          %s283 = smul.addr %s282, 8
          %s284 = scalar_lea.vmem [#allocation2], %s283
          %286 = dma.done %s281, 128
        $region44: #{transformer_decoder_forward.5} parent=39 // pred_fallthru
          _
      $region40: #{transformer_decoder_forward.5} parent=5 // pred_fallthru
        _
    $region6: #{transformer_decoder_forward.5} parent=1 // loop_footer
      %s16 = sadd.s32 1, %s12
    $region7: #{transformer_decoder_forward.5} parent=1 // loop_footer_branch
      %11 = sbr.rel target = $region3
    $region8: #{transformer_decoder_forward.5} parent=1 // loop_exit
      _
    %287 = vsyncpa [#allocation3], 1
    %s288 = scalar_lea.sflag [#allocation3], 1
    %289 = vsyncpa %s288, 1

// kernel: transformer_decoder_forward.3
$region0: #{transformer_decoder_forward.3}
  #allocation0 [shape = 'u32[]', space=smem, size = 0x4, offset = 0x4, fixed_abs, tag = 'smem constant byte address 0x4 - core index']
  #allocation1 [shape = 'u32[72,128]{1,0:T(1,128)}', space=vmem, size = 0x9000, scoped, tag = 'internal scratch']
  %s0 = inlined_call_operand.vmem [shape: f32[2,8,32], index: 0, kind: input, shape index: {}]
  %s1 = inlined_call_operand.vmem [shape: bf16[32,96], index: 1, kind: input, shape index: {}]
  %s2 = inlined_call_operand.vmem [shape: f32[1,96], index: 2, kind: input, shape index: {}]
  %s3 = inlined_call_operand.vmem [shape: bf16[32,32], index: 3, kind: input, shape index: {}]
  %s4 = inlined_call_operand.vmem [shape: f32[1,32], index: 4, kind: input, shape index: {}]
  %s5 = inlined_call_operand.vmem [shape: f32[1,32], index: 5, kind: input, shape index: {}]
  %s6 = inlined_call_operand.vmem [shape: f32[1,32], index: 6, kind: input, shape index: {}]
  %s7 = inlined_call_operand.vmem [shape: bf16[32,64], index: 7, kind: input, shape index: {}]
  %s8 = inlined_call_operand.vmem [shape: f32[1,64], index: 8, kind: input, shape index: {}]
  %s9 = inlined_call_operand.vmem [shape: bf16[64,32], index: 9, kind: input, shape index: {}]
  %s10 = inlined_call_operand.vmem [shape: f32[1,32], index: 10, kind: input, shape index: {}]
  %s11 = inlined_call_operand.vmem [shape: f32[1,32], index: 11, kind: input, shape index: {}]
  %s12 = inlined_call_operand.vmem [shape: f32[1,32], index: 12, kind: input, shape index: {}]
  %s13 = inlined_call_operand.vmem [shape: f32[2,8,32], index: 13, kind: output, shape index: {}]
  %s14 = sld [smem:[#allocation0]]
  $region85: #{transformer_decoder_forward.3} parent=0
    _
  %s16 = ssub.s32 1, %s14
  %s17 = scalar_select 0, %s16, %s14
  loop: start=0, step=1, limit=4
  $region2: #{transformer_decoder_forward.3} parent=0 // loop_pre_header
    _
  $region3: #{transformer_decoder_forward.3} parent=0 // loop_header
    %s19 = sphi 0, %s23
    %p20 = scmp.ge.s32.totalorder %s19, 4
    %s29 = sphi 0, %s31
    %s32 = sphi 0, %s29
    %s33 = sphi 0, %s32
    %s49 = sphi 0, %s33
    %s53 = sphi 0, %s53
    %s55 = sphi 0, %s53
    %s56 = sphi 0, %s55
    %s70 = sphi 0, %s56
    %s74 = sphi 0, %s74
    %s76 = sphi 0, %s74
    %s77 = sphi 0, %s76
    %s91 = sphi 0, %s77
    %s95 = sphi 0, %s95
    %s97 = sphi 0, %s95
    %s98 = sphi 0, %s97
    %s112 = sphi 0, %s98
    %s116 = sphi 0, %s116
    %s118 = sphi 0, %s116
    %s119 = sphi 0, %s118
    %s133 = sphi 0, %s119
    %s137 = sphi 0, %s137
    %s139 = sphi 0, %s137
    %s140 = sphi 0, %s139
    %s154 = sphi 0, %s140
    %s158 = sphi 0, %s158
    %s160 = sphi 0, %s158
    %s161 = sphi 0, %s160
    %s175 = sphi 0, %s161
    %s179 = sphi 0, %s179
    %s181 = sphi 0, %s179
    %s182 = sphi 0, %s181
    %s196 = sphi 0, %s182
    %s200 = sphi 0, %s200
    %s202 = sphi 0, %s200
    %s203 = sphi 0, %s202
    %s217 = sphi 0, %s203
    %s221 = sphi 0, %s221
    %s223 = sphi 0, %s221
    %s224 = sphi 0, %s223
    %s238 = sphi 0, %s224
    %s242 = sphi 0, %s242
    %s244 = sphi 0, %s242
    %s245 = sphi 0, %s244
    %s259 = sphi 0, %s245
    %s263 = sphi 0, %s263
    %s265 = sphi 0, %s263
    %s266 = sphi 0, %s265
    %s280 = sphi 0, %s266
    %s284 = sphi 0, %s284
    %s286 = sphi 0, %s284
    %s287 = sphi 0, %s286
    %s301 = sphi 0, %s287
    %s307 = sphi 0, %s309
    %s310 = sphi 0, %s307
    %s311 = sphi 0, %s310
    %s327 = sphi 0, %s311
  $region4: #{transformer_decoder_forward.3} parent=0 // loop_header_branch
    %22 = sbr.rel (%p20) target = $region8
  $region5: #{transformer_decoder_forward.3} parent=0 // loop_body
    %s24 = ssub.s32 %s19, 1
    %s25 = ssub.s32 %s19, 2
    %s26 = sadd.s32 %s19, 1
    %s27 = ssub.s32 %s19, %s26
    %p28 = scmp.eq.s32.totalorder %s27, 0
    %s30 = sadd.s32 %s29, 1
    %s31 = scalar_select %p28, %s29, %s30
    %p34 = pneg %p28
    %p35 = scmp.eq.s32.totalorder %s19, 1
    %p36 = por %p34, %p35
    %p37 = scmp.ne.s32.totalorder %s29, %s32
    %p38 = scmp.eq.s32.totalorder %s19, 0
    %p39 = por %p37, %p38
    %p40 = scmp.ne.s32.totalorder %s29, %s32
    %p41 = scmp.eq.s32.totalorder %s24, 1
    %p42 = por %p40, %p41
    %p43 = scmp.ne.s32.totalorder %s32, %s33
    %p44 = scmp.eq.s32.totalorder %s24, 0
    %p45 = por %p43, %p44
    %p46 = scmp.ne.s32.totalorder %s32, %s33
    %p47 = scmp.eq.s32.totalorder %s25, 1
    %p48 = por %p46, %p47
    %p50 = scmp.ne.s32.totalorder %s33, %s49
    %p51 = scmp.eq.s32.totalorder %s25, 0
    %p52 = por %p50, %p51
    %s54 = sadd.s32 %s53, 1
    %p57 = scmp.eq.s32.totalorder %s19, 1
    %p58 = scmp.ne.s32.totalorder %s53, %s55
    %p59 = scmp.eq.s32.totalorder %s19, 0
    %p60 = por %p58, %p59
    %p61 = scmp.ne.s32.totalorder %s53, %s55
    %p62 = scmp.eq.s32.totalorder %s24, 1
    %p63 = por %p61, %p62
    %p64 = scmp.ne.s32.totalorder %s55, %s56
    %p65 = scmp.eq.s32.totalorder %s24, 0
    %p66 = por %p64, %p65
    %p67 = scmp.ne.s32.totalorder %s55, %s56
    %p68 = scmp.eq.s32.totalorder %s25, 1
    %p69 = por %p67, %p68
    %p71 = scmp.ne.s32.totalorder %s56, %s70
    %p72 = scmp.eq.s32.totalorder %s25, 0
    %p73 = por %p71, %p72
    %s75 = sadd.s32 %s74, 1
    %p78 = scmp.eq.s32.totalorder %s19, 1
    %p79 = scmp.ne.s32.totalorder %s74, %s76
    %p80 = scmp.eq.s32.totalorder %s19, 0
    %p81 = por %p79, %p80
    %p82 = scmp.ne.s32.totalorder %s74, %s76
    %p83 = scmp.eq.s32.totalorder %s24, 1
    %p84 = por %p82, %p83
    %p85 = scmp.ne.s32.totalorder %s76, %s77
    %p86 = scmp.eq.s32.totalorder %s24, 0
    %p87 = por %p85, %p86
    %p88 = scmp.ne.s32.totalorder %s76, %s77
    %p89 = scmp.eq.s32.totalorder %s25, 1
    %p90 = por %p88, %p89
    %p92 = scmp.ne.s32.totalorder %s77, %s91
    %p93 = scmp.eq.s32.totalorder %s25, 0
    %p94 = por %p92, %p93
    %s96 = sadd.s32 %s95, 1
    %p99 = scmp.eq.s32.totalorder %s19, 1
    %p100 = scmp.ne.s32.totalorder %s95, %s97
    %p101 = scmp.eq.s32.totalorder %s19, 0
    %p102 = por %p100, %p101
    %p103 = scmp.ne.s32.totalorder %s95, %s97
    %p104 = scmp.eq.s32.totalorder %s24, 1
    %p105 = por %p103, %p104
    %p106 = scmp.ne.s32.totalorder %s97, %s98
    %p107 = scmp.eq.s32.totalorder %s24, 0
    %p108 = por %p106, %p107
    %p109 = scmp.ne.s32.totalorder %s97, %s98
    %p110 = scmp.eq.s32.totalorder %s25, 1
    %p111 = por %p109, %p110
    %p113 = scmp.ne.s32.totalorder %s98, %s112
    %p114 = scmp.eq.s32.totalorder %s25, 0
    %p115 = por %p113, %p114
    %s117 = sadd.s32 %s116, 1
    %p120 = scmp.eq.s32.totalorder %s19, 1
    %p121 = scmp.ne.s32.totalorder %s116, %s118
    %p122 = scmp.eq.s32.totalorder %s19, 0
    %p123 = por %p121, %p122
    %p124 = scmp.ne.s32.totalorder %s116, %s118
    %p125 = scmp.eq.s32.totalorder %s24, 1
    %p126 = por %p124, %p125
    %p127 = scmp.ne.s32.totalorder %s118, %s119
    %p128 = scmp.eq.s32.totalorder %s24, 0
    %p129 = por %p127, %p128
    %p130 = scmp.ne.s32.totalorder %s118, %s119
    %p131 = scmp.eq.s32.totalorder %s25, 1
    %p132 = por %p130, %p131
    %p134 = scmp.ne.s32.totalorder %s119, %s133
    %p135 = scmp.eq.s32.totalorder %s25, 0
    %p136 = por %p134, %p135
    %s138 = sadd.s32 %s137, 1
    %p141 = scmp.eq.s32.totalorder %s19, 1
    %p142 = scmp.ne.s32.totalorder %s137, %s139
    %p143 = scmp.eq.s32.totalorder %s19, 0
    %p144 = por %p142, %p143
    %p145 = scmp.ne.s32.totalorder %s137, %s139
    %p146 = scmp.eq.s32.totalorder %s24, 1
    %p147 = por %p145, %p146
    %p148 = scmp.ne.s32.totalorder %s139, %s140
    %p149 = scmp.eq.s32.totalorder %s24, 0
    %p150 = por %p148, %p149
    %p151 = scmp.ne.s32.totalorder %s139, %s140
    %p152 = scmp.eq.s32.totalorder %s25, 1
    %p153 = por %p151, %p152
    %p155 = scmp.ne.s32.totalorder %s140, %s154
    %p156 = scmp.eq.s32.totalorder %s25, 0
    %p157 = por %p155, %p156
    %s159 = sadd.s32 %s158, 1
    %p162 = scmp.eq.s32.totalorder %s19, 1
    %p163 = scmp.ne.s32.totalorder %s158, %s160
    %p164 = scmp.eq.s32.totalorder %s19, 0
    %p165 = por %p163, %p164
    %p166 = scmp.ne.s32.totalorder %s158, %s160
    %p167 = scmp.eq.s32.totalorder %s24, 1
    %p168 = por %p166, %p167
    %p169 = scmp.ne.s32.totalorder %s160, %s161
    %p170 = scmp.eq.s32.totalorder %s24, 0
    %p171 = por %p169, %p170
    %p172 = scmp.ne.s32.totalorder %s160, %s161
    %p173 = scmp.eq.s32.totalorder %s25, 1
    %p174 = por %p172, %p173
    %p176 = scmp.ne.s32.totalorder %s161, %s175
    %p177 = scmp.eq.s32.totalorder %s25, 0
    %p178 = por %p176, %p177
    %s180 = sadd.s32 %s179, 1
    %p183 = scmp.eq.s32.totalorder %s19, 1
    %p184 = scmp.ne.s32.totalorder %s179, %s181
    %p185 = scmp.eq.s32.totalorder %s19, 0
    %p186 = por %p184, %p185
    %p187 = scmp.ne.s32.totalorder %s179, %s181
    %p188 = scmp.eq.s32.totalorder %s24, 1
    %p189 = por %p187, %p188
    %p190 = scmp.ne.s32.totalorder %s181, %s182
    %p191 = scmp.eq.s32.totalorder %s24, 0
    %p192 = por %p190, %p191
    %p193 = scmp.ne.s32.totalorder %s181, %s182
    %p194 = scmp.eq.s32.totalorder %s25, 1
    %p195 = por %p193, %p194
    %p197 = scmp.ne.s32.totalorder %s182, %s196
    %p198 = scmp.eq.s32.totalorder %s25, 0
    %p199 = por %p197, %p198
    %s201 = sadd.s32 %s200, 1
    %p204 = scmp.eq.s32.totalorder %s19, 1
    %p205 = scmp.ne.s32.totalorder %s200, %s202
    %p206 = scmp.eq.s32.totalorder %s19, 0
    %p207 = por %p205, %p206
    %p208 = scmp.ne.s32.totalorder %s200, %s202
    %p209 = scmp.eq.s32.totalorder %s24, 1
    %p210 = por %p208, %p209
    %p211 = scmp.ne.s32.totalorder %s202, %s203
    %p212 = scmp.eq.s32.totalorder %s24, 0
    %p213 = por %p211, %p212
    %p214 = scmp.ne.s32.totalorder %s202, %s203
    %p215 = scmp.eq.s32.totalorder %s25, 1
    %p216 = por %p214, %p215
    %p218 = scmp.ne.s32.totalorder %s203, %s217
    %p219 = scmp.eq.s32.totalorder %s25, 0
    %p220 = por %p218, %p219
    %s222 = sadd.s32 %s221, 1
    %p225 = scmp.eq.s32.totalorder %s19, 1
    %p226 = scmp.ne.s32.totalorder %s221, %s223
    %p227 = scmp.eq.s32.totalorder %s19, 0
    %p228 = por %p226, %p227
    %p229 = scmp.ne.s32.totalorder %s221, %s223
    %p230 = scmp.eq.s32.totalorder %s24, 1
    %p231 = por %p229, %p230
    %p232 = scmp.ne.s32.totalorder %s223, %s224
    %p233 = scmp.eq.s32.totalorder %s24, 0
    %p234 = por %p232, %p233
    %p235 = scmp.ne.s32.totalorder %s223, %s224
    %p236 = scmp.eq.s32.totalorder %s25, 1
    %p237 = por %p235, %p236
    %p239 = scmp.ne.s32.totalorder %s224, %s238
    %p240 = scmp.eq.s32.totalorder %s25, 0
    %p241 = por %p239, %p240
    %s243 = sadd.s32 %s242, 1
    %p246 = scmp.eq.s32.totalorder %s19, 1
    %p247 = scmp.ne.s32.totalorder %s242, %s244
    %p248 = scmp.eq.s32.totalorder %s19, 0
    %p249 = por %p247, %p248
    %p250 = scmp.ne.s32.totalorder %s242, %s244
    %p251 = scmp.eq.s32.totalorder %s24, 1
    %p252 = por %p250, %p251
    %p253 = scmp.ne.s32.totalorder %s244, %s245
    %p254 = scmp.eq.s32.totalorder %s24, 0
    %p255 = por %p253, %p254
    %p256 = scmp.ne.s32.totalorder %s244, %s245
    %p257 = scmp.eq.s32.totalorder %s25, 1
    %p258 = por %p256, %p257
    %p260 = scmp.ne.s32.totalorder %s245, %s259
    %p261 = scmp.eq.s32.totalorder %s25, 0
    %p262 = por %p260, %p261
    %s264 = sadd.s32 %s263, 1
    %p267 = scmp.eq.s32.totalorder %s19, 1
    %p268 = scmp.ne.s32.totalorder %s263, %s265
    %p269 = scmp.eq.s32.totalorder %s19, 0
    %p270 = por %p268, %p269
    %p271 = scmp.ne.s32.totalorder %s263, %s265
    %p272 = scmp.eq.s32.totalorder %s24, 1
    %p273 = por %p271, %p272
    %p274 = scmp.ne.s32.totalorder %s265, %s266
    %p275 = scmp.eq.s32.totalorder %s24, 0
    %p276 = por %p274, %p275
    %p277 = scmp.ne.s32.totalorder %s265, %s266
    %p278 = scmp.eq.s32.totalorder %s25, 1
    %p279 = por %p277, %p278
    %p281 = scmp.ne.s32.totalorder %s266, %s280
    %p282 = scmp.eq.s32.totalorder %s25, 0
    %p283 = por %p281, %p282
    %s285 = sadd.s32 %s284, 1
    %p288 = scmp.eq.s32.totalorder %s19, 1
    %p289 = scmp.ne.s32.totalorder %s284, %s286
    %p290 = scmp.eq.s32.totalorder %s19, 0
    %p291 = por %p289, %p290
    %p292 = scmp.ne.s32.totalorder %s284, %s286
    %p293 = scmp.eq.s32.totalorder %s24, 1
    %p294 = por %p292, %p293
    %p295 = scmp.ne.s32.totalorder %s286, %s287
    %p296 = scmp.eq.s32.totalorder %s24, 0
    %p297 = por %p295, %p296
    %p298 = scmp.ne.s32.totalorder %s286, %s287
    %p299 = scmp.eq.s32.totalorder %s25, 1
    %p300 = por %p298, %p299
    %p302 = scmp.ne.s32.totalorder %s287, %s301
    %p303 = scmp.eq.s32.totalorder %s25, 0
    %p304 = por %p302, %p303
    %s305 = ssub.s32 %s19, %s26
    %p306 = scmp.eq.s32.totalorder %s305, 0
    %s308 = sadd.s32 %s307, 1
    %s309 = scalar_select %p306, %s307, %s308
    %p312 = pneg %p306
    %p313 = scmp.eq.s32.totalorder %s19, 1
    %p314 = por %p312, %p313
    %p315 = scmp.ne.s32.totalorder %s307, %s310
    %p316 = scmp.eq.s32.totalorder %s19, 0
    %p317 = por %p315, %p316
    %p318 = scmp.ne.s32.totalorder %s307, %s310
    %p319 = scmp.eq.s32.totalorder %s24, 1
    %p320 = por %p318, %p319
    %p321 = scmp.ne.s32.totalorder %s310, %s311
    %p322 = scmp.eq.s32.totalorder %s24, 0
    %p323 = por %p321, %p322
    %p324 = scmp.ne.s32.totalorder %s310, %s311
    %p325 = scmp.eq.s32.totalorder %s25, 1
    %p326 = por %p324, %p325
    %p328 = scmp.ne.s32.totalorder %s311, %s327
    %p329 = scmp.eq.s32.totalorder %s25, 0
    %p330 = por %p328, %p329
    %p331 = scmp.le.s32.totalorder 1, %s19
    %p332 = scmp.lt.s32.totalorder %s19, 3
    %p333 = pnand %p331, %p332
    %p334 = pneg %p333
    // Predicated region
    $region9: #{transformer_decoder_forward.3} parent=5 // pred_check
      _
    $region10: #{transformer_decoder_forward.3} parent=5 // pred_check_branch
      %336 = sbr.rel (%p333) target = $region12
    $region11: #{transformer_decoder_forward.3} parent=5 // pred_region
      %s337 = ssub.s32 %s19, 1
      // Predicated region
      $region13: #{transformer_decoder_forward.3} parent=11 // pred_check
        %p338 = pneg %p66
      $region14: #{transformer_decoder_forward.3} parent=11 // pred_check_branch
        %340 = sbr.rel (%p338) target = $region16
      $region15: #{transformer_decoder_forward.3} parent=11 // pred_region
        _
      $region16: #{transformer_decoder_forward.3} parent=11 // pred_fallthru
        _
      // Predicated region
      $region17: #{transformer_decoder_forward.3} parent=11 // pred_check
        %p341 = pneg %p87
      $region18: #{transformer_decoder_forward.3} parent=11 // pred_check_branch
        %343 = sbr.rel (%p341) target = $region20
      $region19: #{transformer_decoder_forward.3} parent=11 // pred_region
        _
      $region20: #{transformer_decoder_forward.3} parent=11 // pred_fallthru
        _
      // Predicated region
      $region21: #{transformer_decoder_forward.3} parent=11 // pred_check
        %p344 = pneg %p108
      $region22: #{transformer_decoder_forward.3} parent=11 // pred_check_branch
        %346 = sbr.rel (%p344) target = $region24
      $region23: #{transformer_decoder_forward.3} parent=11 // pred_region
        _
      $region24: #{transformer_decoder_forward.3} parent=11 // pred_fallthru
        _
      // Predicated region
      $region25: #{transformer_decoder_forward.3} parent=11 // pred_check
        %p347 = pneg %p129
      $region26: #{transformer_decoder_forward.3} parent=11 // pred_check_branch
        %349 = sbr.rel (%p347) target = $region28
      $region27: #{transformer_decoder_forward.3} parent=11 // pred_region
        _
      $region28: #{transformer_decoder_forward.3} parent=11 // pred_fallthru
        _
      // Predicated region
      $region29: #{transformer_decoder_forward.3} parent=11 // pred_check
        %p350 = pneg %p150
      $region30: #{transformer_decoder_forward.3} parent=11 // pred_check_branch
        %352 = sbr.rel (%p350) target = $region32
      $region31: #{transformer_decoder_forward.3} parent=11 // pred_region
        _
      $region32: #{transformer_decoder_forward.3} parent=11 // pred_fallthru
        _
      // Predicated region
      $region33: #{transformer_decoder_forward.3} parent=11 // pred_check
        %p353 = pneg %p171
      $region34: #{transformer_decoder_forward.3} parent=11 // pred_check_branch
        %355 = sbr.rel (%p353) target = $region36
      $region35: #{transformer_decoder_forward.3} parent=11 // pred_region
        _
      $region36: #{transformer_decoder_forward.3} parent=11 // pred_fallthru
        _
      // Predicated region
      $region37: #{transformer_decoder_forward.3} parent=11 // pred_check
        %p356 = pneg %p192
      $region38: #{transformer_decoder_forward.3} parent=11 // pred_check_branch
        %358 = sbr.rel (%p356) target = $region40
      $region39: #{transformer_decoder_forward.3} parent=11 // pred_region
        _
      $region40: #{transformer_decoder_forward.3} parent=11 // pred_fallthru
        _
      // Predicated region
      $region41: #{transformer_decoder_forward.3} parent=11 // pred_check
        %p359 = pneg %p213
      $region42: #{transformer_decoder_forward.3} parent=11 // pred_check_branch
        %361 = sbr.rel (%p359) target = $region44
      $region43: #{transformer_decoder_forward.3} parent=11 // pred_region
        _
      $region44: #{transformer_decoder_forward.3} parent=11 // pred_fallthru
        _
      // Predicated region
      $region45: #{transformer_decoder_forward.3} parent=11 // pred_check
        %p362 = pneg %p234
      $region46: #{transformer_decoder_forward.3} parent=11 // pred_check_branch
        %364 = sbr.rel (%p362) target = $region48
      $region47: #{transformer_decoder_forward.3} parent=11 // pred_region
        _
      $region48: #{transformer_decoder_forward.3} parent=11 // pred_fallthru
        _
      // Predicated region
      $region49: #{transformer_decoder_forward.3} parent=11 // pred_check
        %p365 = pneg %p255
      $region50: #{transformer_decoder_forward.3} parent=11 // pred_check_branch
        %367 = sbr.rel (%p365) target = $region52
      $region51: #{transformer_decoder_forward.3} parent=11 // pred_region
        _
      $region52: #{transformer_decoder_forward.3} parent=11 // pred_fallthru
        _
      // Predicated region
      $region53: #{transformer_decoder_forward.3} parent=11 // pred_check
        %p368 = pneg %p276
      $region54: #{transformer_decoder_forward.3} parent=11 // pred_check_branch
        %370 = sbr.rel (%p368) target = $region56
      $region55: #{transformer_decoder_forward.3} parent=11 // pred_region
        _
      $region56: #{transformer_decoder_forward.3} parent=11 // pred_fallthru
        _
      // Predicated region
      $region57: #{transformer_decoder_forward.3} parent=11 // pred_check
        %p371 = pneg %p297
      $region58: #{transformer_decoder_forward.3} parent=11 // pred_check_branch
        %373 = sbr.rel (%p371) target = $region60
      $region59: #{transformer_decoder_forward.3} parent=11 // pred_region
        _
      $region60: #{transformer_decoder_forward.3} parent=11 // pred_fallthru
        _
    $region12: #{transformer_decoder_forward.3} parent=5 // pred_fallthru
      _
    %p374 = scmp.lt.s32.totalorder %s19, 2
    // Predicated region
    $region61: #{transformer_decoder_forward.3} parent=5 // pred_check
      %p375 = pneg %p374
    $region62: #{transformer_decoder_forward.3} parent=5 // pred_check_branch
      %377 = sbr.rel (%p375) target = $region64
    $region63: #{transformer_decoder_forward.3} parent=5 // pred_region
      // Predicated region
      $region65: #{transformer_decoder_forward.3} parent=63 // pred_check
        %p378 = pneg %p39
      $region66: #{transformer_decoder_forward.3} parent=63 // pred_check_branch
        %380 = sbr.rel (%p378) target = $region68
      $region67: #{transformer_decoder_forward.3} parent=63 // pred_region
        %p381 = scmp.lt.s32.totalorder %s19, 1
        %s382 = scalar_select %p381, %s19, 1
        %s383 = smul.addr %s382, 8
        %s384 = scalar_lea.vmem %s0, %s383
      $region68: #{transformer_decoder_forward.3} parent=63 // pred_fallthru
        _
    $region64: #{transformer_decoder_forward.3} parent=5 // pred_fallthru
      _
    %p385 = scmp.le.s32.totalorder 1, %s19
    %p386 = scmp.lt.s32.totalorder %s19, 3
    %p387 = pnand %p385, %p386
    %p388 = pneg %p387
    // Predicated region
    $region69: #{transformer_decoder_forward.3} parent=5 // pred_check
      _
    $region70: #{transformer_decoder_forward.3} parent=5 // pred_check_branch
      %390 = sbr.rel (%p387) target = $region72
    $region71: #{transformer_decoder_forward.3} parent=5 // pred_region
      %s391 = ssub.s32 %s19, 1
      %p392 = scmp.lt.s32.totalorder %s24, 1
      %s393 = scalar_select %p392, %s24, 1
      %s394 = smul.addr %s393, 8
      %s395 = scalar_lea.vmem %s0, %s394
      %p396 = pneg %p45
      %p397 = pneg %p42
      %p398 = pneg %p66
      %p399 = pneg %p63
      %p400 = pneg %p87
      %p401 = pneg %p84
      %p402 = pneg %p108
      %p403 = pneg %p105
      %p404 = pneg %p129
      %p405 = pneg %p126
      %p406 = pneg %p150
      %p407 = pneg %p147
      %p408 = pneg %p171
      %p409 = pneg %p168
      %p410 = pneg %p192
      %p411 = pneg %p189
      %p412 = pneg %p213
      %p413 = pneg %p210
      %p414 = pneg %p234
      %p415 = pneg %p231
      %p416 = pneg %p255
      %p417 = pneg %p252
      %p418 = pneg %p276
      %p419 = pneg %p273
      %p420 = pneg %p297
      %p421 = pneg %p294
      %p422 = pneg %p323
      %p423 = pneg %p320
      %p424 = scmp.lt.s32.totalorder %s24, 1
      %s425 = scalar_select %p424, %s24, 1
      %s426 = smul.addr %s425, 8
      %s427 = scalar_lea.vmem %s13, %s426
      %p428 = scmp.lt.s32.totalorder %s24, 1
      %s429 = scalar_select %p428, %s24, 1
      %s430 = smul.addr %s429, 8
      %s431 = scalar_lea.vmem %s0, %s430
      %p432 = scmp.lt.s32.totalorder %s24, 1
      %s433 = scalar_select %p432, %s24, 1
      %s434 = smul.addr %s433, 8
      %s435 = scalar_lea.vmem %s13, %s434
      %v437 = vld [vmem:[%s431] sm:$0xff]
      %v438 = vpack.c.bf16 %v437, %v437
      %v439 = vld [vmem:[%s1] sm:$0xf]
      %v440 = vld [vmem:[%s1 + $0x4] sm:$0xf]
      %v441 = vld [vmem:[%s1 + $0x8] sm:$0xf]
      %v442 = vld [vmem:[%s1 + $0xc] sm:$0xf]
      %v443 = vld [vmem:[%s2] sm:$0x1]
      %v445 = vperm.slane %v443, 0
      %v451 = vunpack.c.l.b16 %v439
      %v452 = vunpack.c.l.b16 %v440
      %v453 = vunpack.c.l.b16 %v441
      %v454 = vunpack.c.l.b16 %v442
      %v455 = vpack.c.b16 %v452, %v451
      %v456 = vpack.c.b16 %v454, %v453
      %vm459 = vcmask 261120
      %v461 = vsel %vm459, %v438, 0
      %463 = vmatpush.bf16.msra.mxu0 0
      %464 = vmatpush.bf16.msra.mxu0 0
      %465 = vmatpush.bf16.msra.mxu0 0
      %466 = vmatpush.bf16.msra.mxu0 0
      %467 = vmatpush.bf16.msra.mxu0 0
      %468 = vmatpush.bf16.msra.mxu0 0
      %469 = vmatpush.bf16.msra.mxu0 %v456
      %470 = vmatpush.bf16.msra.mxu0 %v455
      %471 = vmatmul.bf16.gmra.mxu0 %v461
      %v472 = vpop.f32.mrf.mxu0
      %v473 = vadd.f32 %v445, %v472
      %v474 = vpop.f32.mrf.mxu0
      %475 = vdwg.mxu0
      %477 = vrot.lane.b32.xlu0 %v473, 120
      %v478 = vpop.permute.xlu0 %477
      %480 = vrot.lane.b32.xlu0 %v473, 112
      %v481 = vpop.permute.xlu0 %480
      %483 = vrot.lane.b32.xlu0 %v473, 104
      %v484 = vpop.permute.xlu0 %483
      %v486 = vrot.slane %v481, 4
      %vm487 = vcmask 1047556
      %v488 = vsel %vm487, %v486, %v473
      %v489 = vrot.slane %v473, 4
      %v490 = vsel %vm487, %v481, %v489
      %v492 = vunpack.c.l.s4 1983009808
      %v493 = vunpack.c.0.s8 %v492
      %v494 = vperm.slane %v488, %v493
      %v496 = vunpack.c.l.s4 1983009808
      %v497 = vunpack.c.0.s8 %v496
      %v498 = vperm.slane %v490, %v497
      %v499 = vrot.slane %v484, 4
      %v500 = vsel %vm487, %v499, %v478
      %v501 = vrot.slane %v478, 4
      %v502 = vsel %vm487, %v484, %v501
      %v504 = vunpack.c.l.s4 1983009808
      %v505 = vunpack.c.0.s8 %v504
      %v506 = vperm.slane %v500, %v505
      %v508 = vunpack.c.l.s4 1983009808
      %v509 = vunpack.c.0.s8 %v508
      %v510 = vperm.slane %v502, %v509
      %v511 = vrot.slane %v506, 4
      %v512 = vsel %vm487, %v511, %v494
      %v513 = vrot.slane %v494, 4
      %v514 = vsel %vm487, %v506, %v513
      %v516 = vunpack.c.l.s4 1934713408
      %v517 = vunpack.c.0.s8 %v516
      %v518 = vperm.slane %v512, %v517
      %v520 = vunpack.c.l.s4 1934713408
      %v521 = vunpack.c.0.s8 %v520
      %v522 = vperm.slane %v514, %v521
      %v523 = vrot.slane %v510, 4
      %v524 = vsel %vm487, %v523, %v498
      %v525 = vrot.slane %v498, 4
      %v526 = vsel %vm487, %v510, %v525
      %v528 = vunpack.c.l.s4 1934713408
      %v529 = vunpack.c.0.s8 %v528
      %v530 = vperm.slane %v524, %v529
      %v532 = vunpack.c.l.s4 1934713408
      %v533 = vunpack.c.0.s8 %v532
      %v534 = vperm.slane %v526, %v533
      %v535 = vrot.slane %v518, 4
      %v536 = vsel %vm487, 0.0, %v535
      %v537 = vrot.slane %v522, 4
      %v538 = vsel %vm487, 0.0, %v537
      %v539 = vrot.slane %v530, 4
      %v540 = vsel %vm487, 0.0, %v539
      %v541 = vrot.slane %v534, 4
      %v542 = vsel %vm487, 0.0, %v541
      %v543 = vsel %vm487, %v537, %v518
      %v545 = vunpack.c.l.s4 1983009808
      %v546 = vunpack.c.0.s8 %v545
      %v547 = vperm.slane %v543, %v546
      %v548 = vrot.slane %v538, 4
      %v549 = vsel %vm487, %v548, %v536
      %v551 = vunpack.c.l.s4 1983009808
      %v552 = vunpack.c.0.s8 %v551
      %v553 = vperm.slane %v549, %v552
      %v554 = vsel %vm487, %v541, %v530
      %v556 = vunpack.c.l.s4 1983009808
      %v557 = vunpack.c.0.s8 %v556
      %v558 = vperm.slane %v554, %v557
      %v559 = vrot.slane %v542, 4
      %v560 = vsel %vm487, %v559, %v540
      %v562 = vunpack.c.l.s4 1983009808
      %v563 = vunpack.c.0.s8 %v562
      %v564 = vperm.slane %v560, %v563
      %v565 = vrot.slane %v553, 4
      %v566 = vsel %vm487, %v565, %v547
      %v567 = vrot.slane %v547, 4
      %v568 = vsel %vm487, %v553, %v567
      %v570 = vunpack.c.l.s4 1934713408
      %v571 = vunpack.c.0.s8 %v570
      %v572 = vperm.slane %v566, %v571
      %v574 = vunpack.c.l.s4 1934713408
      %v575 = vunpack.c.0.s8 %v574
      %v576 = vperm.slane %v568, %v575
      %v577 = vrot.slane %v564, 4
      %v578 = vsel %vm487, %v577, %v558
      %v579 = vrot.slane %v558, 4
      %v580 = vsel %vm487, %v564, %v579
      %v582 = vunpack.c.l.s4 1934713408
      %v583 = vunpack.c.0.s8 %v582
      %v584 = vperm.slane %v578, %v583
      %v586 = vunpack.c.l.s4 1934713408
      %v587 = vunpack.c.0.s8 %v586
      %v588 = vperm.slane %v580, %v587
      %v589 = vrot.slane %v584, 4
      %v590 = vsel %vm487, %v589, %v572
      %v591 = vrot.slane %v572, 4
      %v592 = vsel %vm487, %v584, %v591
      %v593 = vrot.slane %v588, 4
      %v594 = vsel %vm487, %v593, %v576
      %v595 = vrot.slane %v576, 4
      %v596 = vsel %vm487, %v588, %v595
      %597 = vrot.lane.b32.xlu0 %v473, 96
      %v598 = vpop.permute.xlu0 %597
      %599 = vrot.lane.b32.xlu0 %v478, 96
      %v600 = vpop.permute.xlu0 %599
      %601 = vrot.lane.b32.xlu0 %v481, 96
      %v602 = vpop.permute.xlu0 %601
      %603 = vrot.lane.b32.xlu0 %v484, 96
      %v604 = vpop.permute.xlu0 %603
      %v609 = vrot.slane %v602, 4
      %v610 = vsel %vm487, %v609, %v598
      %v611 = vrot.slane %v598, 4
      %v612 = vsel %vm487, %v602, %v611
      %v614 = vunpack.c.l.s4 1983009808
      %v615 = vunpack.c.0.s8 %v614
      %v616 = vperm.slane %v610, %v615
      %v618 = vunpack.c.l.s4 1983009808
      %v619 = vunpack.c.0.s8 %v618
      %v620 = vperm.slane %v612, %v619
      %v621 = vrot.slane %v604, 4
      %v622 = vsel %vm487, %v621, %v600
      %v623 = vrot.slane %v600, 4
      %v624 = vsel %vm487, %v604, %v623
      %v626 = vunpack.c.l.s4 1983009808
      %v627 = vunpack.c.0.s8 %v626
      %v628 = vperm.slane %v622, %v627
      %v630 = vunpack.c.l.s4 1983009808
      %v631 = vunpack.c.0.s8 %v630
      %v632 = vperm.slane %v624, %v631
      %v633 = vrot.slane %v628, 4
      %v634 = vsel %vm487, %v633, %v616
      %v635 = vrot.slane %v616, 4
      %v636 = vsel %vm487, %v628, %v635
      %v638 = vunpack.c.l.s4 1934713408
      %v639 = vunpack.c.0.s8 %v638
      %v640 = vperm.slane %v634, %v639
      %v642 = vunpack.c.l.s4 1934713408
      %v643 = vunpack.c.0.s8 %v642
      %v644 = vperm.slane %v636, %v643
      %v645 = vrot.slane %v632, 4
      %v646 = vsel %vm487, %v645, %v620
      %v647 = vrot.slane %v620, 4
      %v648 = vsel %vm487, %v632, %v647
      %v650 = vunpack.c.l.s4 1934713408
      %v651 = vunpack.c.0.s8 %v650
      %v652 = vperm.slane %v646, %v651
      %v654 = vunpack.c.l.s4 1934713408
      %v655 = vunpack.c.0.s8 %v654
      %v656 = vperm.slane %v648, %v655
      %v657 = vrot.slane %v640, 4
      %v658 = vsel %vm487, 0.0, %v657
      %v659 = vrot.slane %v644, 4
      %v660 = vsel %vm487, 0.0, %v659
      %v661 = vrot.slane %v652, 4
      %v662 = vsel %vm487, 0.0, %v661
      %v663 = vrot.slane %v656, 4
      %v664 = vsel %vm487, 0.0, %v663
      %v665 = vsel %vm487, %v659, %v640
      %v667 = vunpack.c.l.s4 1983009808
      %v668 = vunpack.c.0.s8 %v667
      %v669 = vperm.slane %v665, %v668
      %v670 = vrot.slane %v660, 4
      %v671 = vsel %vm487, %v670, %v658
      %v673 = vunpack.c.l.s4 1983009808
      %v674 = vunpack.c.0.s8 %v673
      %v675 = vperm.slane %v671, %v674
      %v676 = vsel %vm487, %v663, %v652
      %v678 = vunpack.c.l.s4 1983009808
      %v679 = vunpack.c.0.s8 %v678
      %v680 = vperm.slane %v676, %v679
      %v681 = vrot.slane %v664, 4
      %v682 = vsel %vm487, %v681, %v662
      %v684 = vunpack.c.l.s4 1983009808
      %v685 = vunpack.c.0.s8 %v684
      %v686 = vperm.slane %v682, %v685
      %v687 = vrot.slane %v675, 4
      %v688 = vsel %vm487, %v687, %v669
      %v689 = vrot.slane %v669, 4
      %v690 = vsel %vm487, %v675, %v689
      %v692 = vunpack.c.l.s4 1934713408
      %v693 = vunpack.c.0.s8 %v692
      %v694 = vperm.slane %v688, %v693
      %v696 = vunpack.c.l.s4 1934713408
      %v697 = vunpack.c.0.s8 %v696
      %v698 = vperm.slane %v690, %v697
      %v699 = vrot.slane %v686, 4
      %v700 = vsel %vm487, %v699, %v680
      %v701 = vrot.slane %v680, 4
      %v702 = vsel %vm487, %v686, %v701
      %v704 = vunpack.c.l.s4 1934713408
      %v705 = vunpack.c.0.s8 %v704
      %v706 = vperm.slane %v700, %v705
      %v708 = vunpack.c.l.s4 1934713408
      %v709 = vunpack.c.0.s8 %v708
      %v710 = vperm.slane %v702, %v709
      %v711 = vrot.slane %v706, 4
      %v712 = vsel %vm487, %v711, %v694
      %v713 = vrot.slane %v694, 4
      %v714 = vsel %vm487, %v706, %v713
      %v715 = vrot.slane %v710, 4
      %v716 = vsel %vm487, %v715, %v698
      %v717 = vrot.slane %v698, 4
      %v718 = vsel %vm487, %v710, %v717
      %719 = vrot.lane.b32.xlu0 %v473, 64
      %v720 = vpop.permute.xlu0 %719
      %721 = vrot.lane.b32.xlu0 %v478, 64
      %v722 = vpop.permute.xlu0 %721
      %723 = vrot.lane.b32.xlu0 %v481, 64
      %v724 = vpop.permute.xlu0 %723
      %725 = vrot.lane.b32.xlu0 %v484, 64
      %v726 = vpop.permute.xlu0 %725
      %v731 = vrot.slane %v724, 4
      %v732 = vsel %vm487, %v731, %v720
      %v733 = vrot.slane %v720, 4
      %v734 = vsel %vm487, %v724, %v733
      %v736 = vunpack.c.l.s4 1983009808
      %v737 = vunpack.c.0.s8 %v736
      %v738 = vperm.slane %v732, %v737
      %v740 = vunpack.c.l.s4 1983009808
      %v741 = vunpack.c.0.s8 %v740
      %v742 = vperm.slane %v734, %v741
      %v743 = vrot.slane %v726, 4
      %v744 = vsel %vm487, %v743, %v722
      %v745 = vrot.slane %v722, 4
      %v746 = vsel %vm487, %v726, %v745
      %v748 = vunpack.c.l.s4 1983009808
      %v749 = vunpack.c.0.s8 %v748
      %v750 = vperm.slane %v744, %v749
      %v752 = vunpack.c.l.s4 1983009808
      %v753 = vunpack.c.0.s8 %v752
      %v754 = vperm.slane %v746, %v753
      %v755 = vrot.slane %v750, 4
      %v756 = vsel %vm487, %v755, %v738
      %v757 = vrot.slane %v738, 4
      %v758 = vsel %vm487, %v750, %v757
      %v760 = vunpack.c.l.s4 1934713408
      %v761 = vunpack.c.0.s8 %v760
      %v762 = vperm.slane %v756, %v761
      %v764 = vunpack.c.l.s4 1934713408
      %v765 = vunpack.c.0.s8 %v764
      %v766 = vperm.slane %v758, %v765
      %v767 = vrot.slane %v754, 4
      %v768 = vsel %vm487, %v767, %v742
      %v769 = vrot.slane %v742, 4
      %v770 = vsel %vm487, %v754, %v769
      %v772 = vunpack.c.l.s4 1934713408
      %v773 = vunpack.c.0.s8 %v772
      %v774 = vperm.slane %v768, %v773
      %v776 = vunpack.c.l.s4 1934713408
      %v777 = vunpack.c.0.s8 %v776
      %v778 = vperm.slane %v770, %v777
      %v779 = vrot.slane %v762, 4
      %v780 = vsel %vm487, 0.0, %v779
      %v781 = vrot.slane %v766, 4
      %v782 = vsel %vm487, 0.0, %v781
      %v783 = vrot.slane %v774, 4
      %v784 = vsel %vm487, 0.0, %v783
      %v785 = vrot.slane %v778, 4
      %v786 = vsel %vm487, 0.0, %v785
      %v787 = vsel %vm487, %v781, %v762
      %v789 = vunpack.c.l.s4 1983009808
      %v790 = vunpack.c.0.s8 %v789
      %v791 = vperm.slane %v787, %v790
      %v792 = vrot.slane %v782, 4
      %v793 = vsel %vm487, %v792, %v780
      %v795 = vunpack.c.l.s4 1983009808
      %v796 = vunpack.c.0.s8 %v795
      %v797 = vperm.slane %v793, %v796
      %v798 = vsel %vm487, %v785, %v774
      %v800 = vunpack.c.l.s4 1983009808
      %v801 = vunpack.c.0.s8 %v800
      %v802 = vperm.slane %v798, %v801
      %v803 = vrot.slane %v786, 4
      %v804 = vsel %vm487, %v803, %v784
      %v806 = vunpack.c.l.s4 1983009808
      %v807 = vunpack.c.0.s8 %v806
      %v808 = vperm.slane %v804, %v807
      %v809 = vrot.slane %v797, 4
      %v810 = vsel %vm487, %v809, %v791
      %v811 = vrot.slane %v791, 4
      %v812 = vsel %vm487, %v797, %v811
      %v814 = vunpack.c.l.s4 1934713408
      %v815 = vunpack.c.0.s8 %v814
      %v816 = vperm.slane %v810, %v815
      %v818 = vunpack.c.l.s4 1934713408
      %v819 = vunpack.c.0.s8 %v818
      %v820 = vperm.slane %v812, %v819
      %v821 = vrot.slane %v808, 4
      %v822 = vsel %vm487, %v821, %v802
      %v823 = vrot.slane %v802, 4
      %v824 = vsel %vm487, %v808, %v823
      %v826 = vunpack.c.l.s4 1934713408
      %v827 = vunpack.c.0.s8 %v826
      %v828 = vperm.slane %v822, %v827
      %v830 = vunpack.c.l.s4 1934713408
      %v831 = vunpack.c.0.s8 %v830
      %v832 = vperm.slane %v824, %v831
      %v833 = vrot.slane %v828, 4
      %v834 = vsel %vm487, %v833, %v816
      %v835 = vrot.slane %v816, 4
      %v836 = vsel %vm487, %v828, %v835
      %v837 = vrot.slane %v832, 4
      %v838 = vsel %vm487, %v837, %v820
      %v839 = vrot.slane %v820, 4
      %v840 = vsel %vm487, %v832, %v839
      %v841 = vmul.f32 %v590, 0.35355338
      %v842 = vmul.f32 %v592, 0.35355338
      %v843 = vmul.f32 %v594, 0.35355338
      %v844 = vmul.f32 %v596, 0.35355338
      %v845 = vpack.c.bf16 %v841, %v841
      %v846 = vpack.c.bf16 %v842, %v842
      %v847 = vpack.c.bf16 %v843, %v843
      %v848 = vpack.c.bf16 %v844, %v844
      %v849 = vpack.c.bf16 %v712, %v712
      %v850 = vpack.c.bf16 %v714, %v714
      %v851 = vpack.c.bf16 %v716, %v716
      %v852 = vpack.c.bf16 %v718, %v718
      %vm853 = vcmask 64512
      %v855 = vsel %vm853, %v845, 0
      %v858 = vsel %vm853, %v849, 0
      %860 = vmatpush.bf16.xpose.msra.mxu0 0
      %861 = vmatpush.bf16.xpose.msra.mxu0 0
      %862 = vmatpush.bf16.xpose.msra.mxu0 0
      %863 = vmatpush.bf16.xpose.msra.mxu0 0
      %864 = vmatpush.bf16.xpose.msra.mxu0 0
      %865 = vmatpush.bf16.xpose.msra.mxu0 0
      %866 = vmatpush.bf16.xpose.msra.mxu0 0
      %867 = vmatpush.bf16.xpose.msra.mxu0 %v858
      %868 = vmatmul.bf16.gmra.mxu0 %v855
      %v869 = vpop.f32.mrf.mxu0
      %v870 = vadd.f32 0.0, %v869
      %v871 = vpop.f32.mrf.mxu0
      %872 = vdwg.mxu0
      %v874 = vsel %vm853, %v846, 0
      %v877 = vsel %vm853, %v850, 0
      %879 = vmatpush.bf16.xpose.msra.mxu0 0
      %880 = vmatpush.bf16.xpose.msra.mxu0 0
      %881 = vmatpush.bf16.xpose.msra.mxu0 0
      %882 = vmatpush.bf16.xpose.msra.mxu0 0
      %883 = vmatpush.bf16.xpose.msra.mxu0 0
      %884 = vmatpush.bf16.xpose.msra.mxu0 0
      %885 = vmatpush.bf16.xpose.msra.mxu0 0
      %886 = vmatpush.bf16.xpose.msra.mxu0 %v877
      %887 = vmatmul.bf16.gmra.mxu0 %v874
      %v888 = vpop.f32.mrf.mxu0
      %v889 = vadd.f32 0.0, %v888
      %v890 = vpop.f32.mrf.mxu0
      %891 = vdwg.mxu0
      %v893 = vsel %vm853, %v847, 0
      %v896 = vsel %vm853, %v851, 0
      %898 = vmatpush.bf16.xpose.msra.mxu0 0
      %899 = vmatpush.bf16.xpose.msra.mxu0 0
      %900 = vmatpush.bf16.xpose.msra.mxu0 0
      %901 = vmatpush.bf16.xpose.msra.mxu0 0
      %902 = vmatpush.bf16.xpose.msra.mxu0 0
      %903 = vmatpush.bf16.xpose.msra.mxu0 0
      %904 = vmatpush.bf16.xpose.msra.mxu0 0
      %905 = vmatpush.bf16.xpose.msra.mxu0 %v896
      %906 = vmatmul.bf16.gmra.mxu0 %v893
      %v907 = vpop.f32.mrf.mxu0
      %v908 = vadd.f32 0.0, %v907
      %v909 = vpop.f32.mrf.mxu0
      %910 = vdwg.mxu0
      %v912 = vsel %vm853, %v848, 0
      %v915 = vsel %vm853, %v852, 0
      %917 = vmatpush.bf16.xpose.msra.mxu0 0
      %918 = vmatpush.bf16.xpose.msra.mxu0 0
      %919 = vmatpush.bf16.xpose.msra.mxu0 0
      %920 = vmatpush.bf16.xpose.msra.mxu0 0
      %921 = vmatpush.bf16.xpose.msra.mxu0 0
      %922 = vmatpush.bf16.xpose.msra.mxu0 0
      %923 = vmatpush.bf16.xpose.msra.mxu0 0
      %924 = vmatpush.bf16.xpose.msra.mxu0 %v915
      %925 = vmatmul.bf16.gmra.mxu0 %v912
      %v926 = vpop.f32.mrf.mxu0
      %v927 = vadd.f32 0.0, %v926
      %v928 = vpop.f32.mrf.mxu0
      %929 = vdwg.mxu0
      %v930 = vlaneseq
      %v931 = vshrl.u32 %v930, 7
      %v932 = vlaneseq
      %v933 = vand.u32 %v932, 127
      %vm934 = vcmp.le.s32.totalorder %v933, %v931
      %v935 = vsel %vm934, 1, 0
      %vm936 = vcmp.eq.s32.totalorder %v935, 1
      %v937 = vsel %vm936, %v870, -1e+30
      %v938 = vsel %vm936, %v889, -1e+30
      %v939 = vsel %vm936, %v908, -1e+30
      %v940 = vsel %vm936, %v927, -1e+30
      %v941 = vsel %vm853, %v937, -inf
      %942 = vmax.xlane.f32.xlu0 %v941
      %v943 = vpop.xlane.xlu0 %942
      %v944 = vsel %vm853, %v938, -inf
      %945 = vmax.xlane.f32.xlu0 %v944
      %v946 = vpop.xlane.xlu0 %945
      %v947 = vsel %vm853, %v939, -inf
      %948 = vmax.xlane.f32.xlu0 %v947
      %v949 = vpop.xlane.xlu0 %948
      %v950 = vsel %vm853, %v940, -inf
      %951 = vmax.xlane.f32.xlu0 %v950
      %v952 = vpop.xlane.xlu0 %951
      %v953 = vsub.f32 %v937, %v943
      %v954 = vsub.f32 %v938, %v946
      %v955 = vsub.f32 %v939, %v949
      %v956 = vsub.f32 %v940, %v952
      %v957 = vmul.f32 %v953, 1.442695
      %v958 = vpow.pop %v957
      %v959 = vmul.f32 %v954, 1.442695
      %v960 = vpow.pop %v959
      %v961 = vmul.f32 %v955, 1.442695
      %v962 = vpow.pop %v961
      %v963 = vmul.f32 %v956, 1.442695
      %v964 = vpow.pop %v963
      %v965 = vsel %vm853, %v958, 0.0
      %966 = vadd.xlane.f32.xlu0 %v965
      %v967 = vpop.xlane.xlu0 %966
      %v968 = vsel %vm853, %v960, 0.0
      %969 = vadd.xlane.f32.xlu0 %v968
      %v970 = vpop.xlane.xlu0 %969
      %v971 = vsel %vm853, %v962, 0.0
      %972 = vadd.xlane.f32.xlu0 %v971
      %v973 = vpop.xlane.xlu0 %972
      %v974 = vsel %vm853, %v964, 0.0
      %975 = vadd.xlane.f32.xlu0 %v974
      %v976 = vpop.xlane.xlu0 %975
      %v977 = vrcp.pop %v967
      %v978 = vrcp.pop %v970
      %v979 = vrcp.pop %v973
      %v980 = vrcp.pop %v976
      %v981 = vmul.f32 %v958, %v977
      %v982 = vmul.f32 %v960, %v978
      %v983 = vmul.f32 %v962, %v979
      %v984 = vmul.f32 %v964, %v980
      %v985 = vpack.c.bf16 %v981, %v981
      %v986 = vpack.c.bf16 %v982, %v982
      %v987 = vpack.c.bf16 %v983, %v983
      %v988 = vpack.c.bf16 %v984, %v984
      %v989 = vpack.c.bf16 %v834, %v834
      %v990 = vpack.c.bf16 %v836, %v836
      %v991 = vpack.c.bf16 %v838, %v838
      %v992 = vpack.c.bf16 %v840, %v840
      %v994 = vsel %vm853, %v985, 0
      %vm996 = vcmask 1043456
      %v998 = vsel %vm996, %v989, 0
      %1000 = vmatpush.bf16.msra.mxu0 0
      %1001 = vmatpush.bf16.msra.mxu0 0
      %1002 = vmatpush.bf16.msra.mxu0 0
      %1003 = vmatpush.bf16.msra.mxu0 0
      %1004 = vmatpush.bf16.msra.mxu0 0
      %1005 = vmatpush.bf16.msra.mxu0 0
      %1006 = vmatpush.bf16.msra.mxu0 0
      %1007 = vmatpush.bf16.msra.mxu0 %v998
      %1008 = vmatmul.bf16.gmra.mxu0 %v994
      %v1009 = vpop.f32.mrf.mxu0
      %v1010 = vadd.f32 0.0, %v1009
      %v1011 = vpop.f32.mrf.mxu0
      %1012 = vdwg.mxu0
      %v1014 = vsel %vm853, %v986, 0
      %v1017 = vsel %vm996, %v990, 0
      %1019 = vmatpush.bf16.msra.mxu0 0
      %1020 = vmatpush.bf16.msra.mxu0 0
      %1021 = vmatpush.bf16.msra.mxu0 0
      %1022 = vmatpush.bf16.msra.mxu0 0
      %1023 = vmatpush.bf16.msra.mxu0 0
      %1024 = vmatpush.bf16.msra.mxu0 0
      %1025 = vmatpush.bf16.msra.mxu0 0
      %1026 = vmatpush.bf16.msra.mxu0 %v1017
      %1027 = vmatmul.bf16.gmra.mxu0 %v1014
      %v1028 = vpop.f32.mrf.mxu0
      %v1029 = vadd.f32 0.0, %v1028
      %v1030 = vpop.f32.mrf.mxu0
      %1031 = vdwg.mxu0
      %v1033 = vsel %vm853, %v987, 0
      %v1036 = vsel %vm996, %v991, 0
      %1038 = vmatpush.bf16.msra.mxu0 0
      %1039 = vmatpush.bf16.msra.mxu0 0
      %1040 = vmatpush.bf16.msra.mxu0 0
      %1041 = vmatpush.bf16.msra.mxu0 0
      %1042 = vmatpush.bf16.msra.mxu0 0
      %1043 = vmatpush.bf16.msra.mxu0 0
      %1044 = vmatpush.bf16.msra.mxu0 0
      %1045 = vmatpush.bf16.msra.mxu0 %v1036
      %1046 = vmatmul.bf16.gmra.mxu0 %v1033
      %v1047 = vpop.f32.mrf.mxu0
      %v1048 = vadd.f32 0.0, %v1047
      %v1049 = vpop.f32.mrf.mxu0
      %1050 = vdwg.mxu0
      %v1052 = vsel %vm853, %v988, 0
      %v1055 = vsel %vm996, %v992, 0
      %1057 = vmatpush.bf16.msra.mxu0 0
      %1058 = vmatpush.bf16.msra.mxu0 0
      %1059 = vmatpush.bf16.msra.mxu0 0
      %1060 = vmatpush.bf16.msra.mxu0 0
      %1061 = vmatpush.bf16.msra.mxu0 0
      %1062 = vmatpush.bf16.msra.mxu0 0
      %1063 = vmatpush.bf16.msra.mxu0 0
      %1064 = vmatpush.bf16.msra.mxu0 %v1055
      %1065 = vmatmul.bf16.gmra.mxu0 %v1052
      %v1066 = vpop.f32.mrf.mxu0
      %v1067 = vadd.f32 0.0, %v1066
      %v1068 = vpop.f32.mrf.mxu0
      %1069 = vdwg.mxu0
      %v1070 = vrot.slane %v1048, 4
      %v1071 = vsel %vm487, %v1070, %v1010
      %v1072 = vrot.slane %v1010, 4
      %v1073 = vsel %vm487, %v1048, %v1072
      %v1075 = vunpack.c.l.s4 1983009808
      %v1076 = vunpack.c.0.s8 %v1075
      %v1077 = vperm.slane %v1071, %v1076
      %v1079 = vunpack.c.l.s4 1983009808
      %v1080 = vunpack.c.0.s8 %v1079
      %v1081 = vperm.slane %v1073, %v1080
      %v1082 = vrot.slane %v1067, 4
      %v1083 = vsel %vm487, %v1082, %v1029
      %v1084 = vrot.slane %v1029, 4
      %v1085 = vsel %vm487, %v1067, %v1084
      %v1087 = vunpack.c.l.s4 1983009808
      %v1088 = vunpack.c.0.s8 %v1087
      %v1089 = vperm.slane %v1083, %v1088
      %v1091 = vunpack.c.l.s4 1983009808
      %v1092 = vunpack.c.0.s8 %v1091
      %v1093 = vperm.slane %v1085, %v1092
      %v1094 = vrot.slane %v1089, 4
      %v1095 = vsel %vm487, %v1094, %v1077
      %v1096 = vrot.slane %v1077, 4
      %v1097 = vsel %vm487, %v1089, %v1096
      %v1099 = vunpack.c.l.s4 1934713408
      %v1100 = vunpack.c.0.s8 %v1099
      %v1101 = vperm.slane %v1095, %v1100
      %v1103 = vunpack.c.l.s4 1934713408
      %v1104 = vunpack.c.0.s8 %v1103
      %v1105 = vperm.slane %v1097, %v1104
      %v1106 = vrot.slane %v1093, 4
      %v1107 = vsel %vm487, %v1106, %v1081
      %v1108 = vrot.slane %v1081, 4
      %v1109 = vsel %vm487, %v1093, %v1108
      %v1111 = vunpack.c.l.s4 1934713408
      %v1112 = vunpack.c.0.s8 %v1111
      %v1113 = vperm.slane %v1107, %v1112
      %v1115 = vunpack.c.l.s4 1934713408
      %v1116 = vunpack.c.0.s8 %v1115
      %v1117 = vperm.slane %v1109, %v1116
      %v1118 = vrot.slane %v1101, 4
      %v1119 = vsel %vm487, 0.0, %v1118
      %v1120 = vrot.slane %v1105, 4
      %v1121 = vsel %vm487, 0.0, %v1120
      %v1122 = vrot.slane %v1113, 4
      %v1123 = vsel %vm487, 0.0, %v1122
      %v1124 = vrot.slane %v1117, 4
      %v1125 = vsel %vm487, 0.0, %v1124
      %v1126 = vsel %vm487, %v1120, %v1101
      %v1128 = vunpack.c.l.s4 1983009808
      %v1129 = vunpack.c.0.s8 %v1128
      %v1130 = vperm.slane %v1126, %v1129
      %v1131 = vrot.slane %v1121, 4
      %v1132 = vsel %vm487, %v1131, %v1119
      %v1134 = vunpack.c.l.s4 1983009808
      %v1135 = vunpack.c.0.s8 %v1134
      %v1136 = vperm.slane %v1132, %v1135
      %v1137 = vsel %vm487, %v1124, %v1113
      %v1139 = vunpack.c.l.s4 1983009808
      %v1140 = vunpack.c.0.s8 %v1139
      %v1141 = vperm.slane %v1137, %v1140
      %v1142 = vrot.slane %v1125, 4
      %v1143 = vsel %vm487, %v1142, %v1123
      %v1145 = vunpack.c.l.s4 1983009808
      %v1146 = vunpack.c.0.s8 %v1145
      %v1147 = vperm.slane %v1143, %v1146
      %v1148 = vrot.slane %v1136, 4
      %v1149 = vsel %vm487, %v1148, %v1130
      %v1150 = vrot.slane %v1130, 4
      %v1151 = vsel %vm487, %v1136, %v1150
      %v1153 = vunpack.c.l.s4 1934713408
      %v1154 = vunpack.c.0.s8 %v1153
      %v1155 = vperm.slane %v1149, %v1154
      %v1157 = vunpack.c.l.s4 1934713408
      %v1158 = vunpack.c.0.s8 %v1157
      %v1159 = vperm.slane %v1151, %v1158
      %v1160 = vrot.slane %v1147, 4
      %v1161 = vsel %vm487, %v1160, %v1141
      %v1162 = vrot.slane %v1141, 4
      %v1163 = vsel %vm487, %v1147, %v1162
      %v1165 = vunpack.c.l.s4 1934713408
      %v1166 = vunpack.c.0.s8 %v1165
      %v1167 = vperm.slane %v1161, %v1166
      %v1169 = vunpack.c.l.s4 1934713408
      %v1170 = vunpack.c.0.s8 %v1169
      %v1171 = vperm.slane %v1163, %v1170
      %v1172 = vrot.slane %v1167, 4
      %v1173 = vsel %vm487, %v1172, %v1155
      %v1174 = vrot.slane %v1155, 4
      %v1175 = vsel %vm487, %v1167, %v1174
      %v1176 = vrot.slane %v1171, 4
      %v1177 = vsel %vm487, %v1176, %v1159
      %v1178 = vrot.slane %v1159, 4
      %v1179 = vsel %vm487, %v1171, %v1178
      %1181 = vrot.lane.b32.xlu0 %v1175, 8
      %v1182 = vpop.permute.xlu0 %1181
      %1185 = vrot.lane.b32.xlu0 %v1177, 16
      %v1186 = vpop.permute.xlu0 %1185
      %1189 = vrot.lane.b32.xlu0 %v1179, 24
      %v1190 = vpop.permute.xlu0 %1189
      %v1192 = vsel %vm853, %v1173, %v1182
      %vm1193 = vcmask 130048
      %v1194 = vsel %vm1193, %v1192, %v1186
      %vm1195 = vcmask 195584
      %v1196 = vsel %vm1195, %v1194, %v1190
      %v1197 = vpack.c.bf16 %v1196, %v1196
      %v1198 = vld [vmem:[%s3] sm:$0xf]
      %v1199 = vld [vmem:[%s3 + $0x4] sm:$0xf]
      %v1200 = vld [vmem:[%s3 + $0x8] sm:$0xf]
      %v1201 = vld [vmem:[%s3 + $0xc] sm:$0xf]
      %v1202 = vld [vmem:[%s4] sm:$0x1]
      %v1204 = vperm.slane %v1202, 0
      %v1210 = vunpack.c.l.b16 %v1198
      %v1211 = vunpack.c.l.b16 %v1199
      %v1212 = vunpack.c.l.b16 %v1200
      %v1213 = vunpack.c.l.b16 %v1201
      %v1214 = vpack.c.b16 %v1211, %v1210
      %v1215 = vpack.c.b16 %v1213, %v1212
      %v1219 = vsel %vm459, %v1197, 0
      %1221 = vmatpush.bf16.msra.mxu0 0
      %1222 = vmatpush.bf16.msra.mxu0 0
      %1223 = vmatpush.bf16.msra.mxu0 0
      %1224 = vmatpush.bf16.msra.mxu0 0
      %1225 = vmatpush.bf16.msra.mxu0 0
      %1226 = vmatpush.bf16.msra.mxu0 0
      %1227 = vmatpush.bf16.msra.mxu0 %v1215
      %1228 = vmatpush.bf16.msra.mxu0 %v1214
      %1229 = vmatmul.bf16.gmra.mxu0 %v1219
      %v1230 = vpop.f32.mrf.mxu0
      %v1231 = vadd.f32 %v1204, %v1230
      %v1232 = vpop.f32.mrf.mxu0
      %1233 = vdwg.mxu0
      %v1234 = vadd.f32 %v437, %v1231
      %v1235 = vsel %vm459, %v1234, 0.0
      %1236 = vadd.xlane.f32.xlu0 %v1235
      %v1237 = vpop.xlane.xlu0 %1236
      %v1238 = vrcp.pop 32.0
      %v1239 = vmul.f32 32.0, %v1238
      %v1240 = vsub.f32 1.0, %v1239
      %v1241 = vmul.f32 %v1238, %v1240
      %v1242 = vadd.f32 %v1238, %v1241
      %vm1243 = vweird.f32 %v1238
      %v1244 = vsel %vm1243, %v1238, %v1242
      %v1245 = vmul.f32 %v1237, %v1244
      %v1246 = vsub.f32 %v1234, %v1245
      %v1247 = vmul.f32 %v1246, %v1246
      %v1248 = vsel %vm459, %v1247, 0.0
      %1249 = vadd.xlane.f32.xlu0 %v1248
      %v1250 = vpop.xlane.xlu0 %1249
      %v1251 = vmul.f32 %v1250, %v1244
      %v1252 = vadd.f32 %v1251, 1e-05
      %v1253 = vrsqrt.pop %v1252
      %v1254 = vmul.f32 %v1253, %v1252
      %v1255 = vmul.f32 %v1254, %v1253
      %v1256 = vmul.f32 0.5, %v1255
      %v1257 = vsub.f32 1.5, %v1256
      %v1258 = vmul.f32 %v1253, %v1257
      %vm1259 = vweird.f32 %v1252
      %vm1260 = vweird.f32 %v1253
      %vm1261 = vmor %vm1259, %vm1260
      %v1262 = vsel %vm1261, %v1253, %v1258
      %v1263 = vmul.f32 %v1246, %v1262
      %v1264 = vld [vmem:[%s5] sm:$0x1]
      %v1266 = vperm.slane %v1264, 0
      %v1268 = vmul.f32 %v1263, %v1266
      %v1269 = vld [vmem:[%s6] sm:$0x1]
      %v1271 = vperm.slane %v1269, 0
      %v1273 = vadd.f32 %v1268, %v1271
      %v1274 = vpack.c.bf16 %v1273, %v1273
      %v1275 = vld [vmem:[%s7] sm:$0xf]
      %v1276 = vld [vmem:[%s7 + $0x4] sm:$0xf]
      %v1277 = vld [vmem:[%s7 + $0x8] sm:$0xf]
      %v1278 = vld [vmem:[%s7 + $0xc] sm:$0xf]
      %v1279 = vld [vmem:[%s8] sm:$0x1]
      %v1281 = vperm.slane %v1279, 0
      %v1287 = vunpack.c.l.b16 %v1275
      %v1288 = vunpack.c.l.b16 %v1276
      %v1289 = vunpack.c.l.b16 %v1277
      %v1290 = vunpack.c.l.b16 %v1278
      %v1291 = vpack.c.b16 %v1288, %v1287
      %v1292 = vpack.c.b16 %v1290, %v1289
      %v1296 = vsel %vm459, %v1274, 0
      %1298 = vmatpush.bf16.msra.mxu0 0
      %1299 = vmatpush.bf16.msra.mxu0 0
      %1300 = vmatpush.bf16.msra.mxu0 0
      %1301 = vmatpush.bf16.msra.mxu0 0
      %1302 = vmatpush.bf16.msra.mxu0 0
      %1303 = vmatpush.bf16.msra.mxu0 0
      %1304 = vmatpush.bf16.msra.mxu0 %v1292
      %1305 = vmatpush.bf16.msra.mxu0 %v1291
      %1306 = vmatmul.bf16.gmra.mxu0 %v1296
      %v1307 = vpop.f32.mrf.mxu0
      %v1308 = vadd.f32 %v1281, %v1307
      %v1309 = vpop.f32.mrf.mxu0
      %1310 = vdwg.mxu0
      %v1311 = vmax.f32 %v1308, 0.0
      %v1312 = vpack.c.bf16 %v1311, %v1311
      %v1313 = vld [vmem:[%s9] sm:$0xf]
      %v1314 = vld [vmem:[%s9 + $0x4] sm:$0xf]
      %v1315 = vld [vmem:[%s9 + $0x8] sm:$0xf]
      %v1316 = vld [vmem:[%s9 + $0xc] sm:$0xf]
      %v1317 = vld [vmem:[%s9 + $0x10] sm:$0xf]
      %v1318 = vld [vmem:[%s9 + $0x14] sm:$0xf]
      %v1319 = vld [vmem:[%s9 + $0x18] sm:$0xf]
      %v1320 = vld [vmem:[%s9 + $0x1c] sm:$0xf]
      %v1321 = vld [vmem:[%s10] sm:$0x1]
      %v1323 = vperm.slane %v1321, 0
      %v1333 = vunpack.c.l.b16 %v1313
      %v1334 = vunpack.c.l.b16 %v1314
      %v1335 = vunpack.c.l.b16 %v1315
      %v1336 = vunpack.c.l.b16 %v1316
      %v1337 = vunpack.c.l.b16 %v1317
      %v1338 = vunpack.c.l.b16 %v1318
      %v1339 = vunpack.c.l.b16 %v1319
      %v1340 = vunpack.c.l.b16 %v1320
      %v1341 = vpack.c.b16 %v1334, %v1333
      %v1342 = vpack.c.b16 %v1336, %v1335
      %v1343 = vpack.c.b16 %v1338, %v1337
      %v1344 = vpack.c.b16 %v1340, %v1339
      %vm1349 = vcmask 523264
      %v1351 = vsel %vm1349, %v1312, 0
      %1353 = vmatpush.bf16.msra.mxu0 0
      %1354 = vmatpush.bf16.msra.mxu0 0
      %1355 = vmatpush.bf16.msra.mxu0 0
      %1356 = vmatpush.bf16.msra.mxu0 0
      %1357 = vmatpush.bf16.msra.mxu0 %v1344
      %1358 = vmatpush.bf16.msra.mxu0 %v1343
      %1359 = vmatpush.bf16.msra.mxu0 %v1342
      %1360 = vmatpush.bf16.msra.mxu0 %v1341
      %1361 = vmatmul.bf16.gmra.mxu0 %v1351
      %v1362 = vpop.f32.mrf.mxu0
      %v1363 = vadd.f32 %v1323, %v1362
      %v1364 = vpop.f32.mrf.mxu0
      %1365 = vdwg.mxu0
      %v1366 = vadd.f32 %v1273, %v1363
      %v1367 = vsel %vm459, %v1366, 0.0
      %1368 = vadd.xlane.f32.xlu0 %v1367
      %v1369 = vpop.xlane.xlu0 %1368
      %v1370 = vmul.f32 %v1369, %v1244
      %v1371 = vsub.f32 %v1366, %v1370
      %v1372 = vmul.f32 %v1371, %v1371
      %v1373 = vsel %vm459, %v1372, 0.0
      %1374 = vadd.xlane.f32.xlu0 %v1373
      %v1375 = vpop.xlane.xlu0 %1374
      %v1376 = vmul.f32 %v1375, %v1244
      %v1377 = vadd.f32 %v1376, 1e-05
      %v1378 = vrsqrt.pop %v1377
      %v1379 = vmul.f32 %v1378, %v1377
      %v1380 = vmul.f32 %v1379, %v1378
      %v1381 = vmul.f32 0.5, %v1380
      %v1382 = vsub.f32 1.5, %v1381
      %v1383 = vmul.f32 %v1378, %v1382
      %vm1384 = vweird.f32 %v1377
      %vm1385 = vweird.f32 %v1378
      %vm1386 = vmor %vm1384, %vm1385
      %v1387 = vsel %vm1386, %v1378, %v1383
      %v1388 = vmul.f32 %v1371, %v1387
      %v1389 = vld [vmem:[%s11] sm:$0x1]
      %v1391 = vperm.slane %v1389, 0
      %v1393 = vmul.f32 %v1388, %v1391
      %v1394 = vld [vmem:[%s12] sm:$0x1]
      %v1396 = vperm.slane %v1394, 0
      %v1398 = vadd.f32 %v1393, %v1396
      %1399 = vst.msk [vmem:[%s435] sm:$0xff] %vm459, %v1398
      %p1400 = scmp.lt.s32.totalorder %s24, 1
      %s1401 = scalar_select %p1400, %s24, 1
      %s1402 = smul.addr %s1401, 8
      %s1403 = scalar_lea.vmem %s13, %s1402
      // Predicated region
      $region73: #{transformer_decoder_forward.3} parent=71 // pred_check
        %p1404 = pneg %p320
      $region74: #{transformer_decoder_forward.3} parent=71 // pred_check_branch
        %1406 = sbr.rel (%p1404) target = $region76
      $region75: #{transformer_decoder_forward.3} parent=71 // pred_region
        _
      $region76: #{transformer_decoder_forward.3} parent=71 // pred_fallthru
        _
    $region72: #{transformer_decoder_forward.3} parent=5 // pred_fallthru
      _
    %p1407 = scmp.le.s32.totalorder 2, %s19
    // Predicated region
    $region77: #{transformer_decoder_forward.3} parent=5 // pred_check
      %p1408 = pneg %p1407
    $region78: #{transformer_decoder_forward.3} parent=5 // pred_check_branch
      %1410 = sbr.rel (%p1408) target = $region80
    $region79: #{transformer_decoder_forward.3} parent=5 // pred_region
      %s1411 = ssub.s32 %s19, 2
      // Predicated region
      $region81: #{transformer_decoder_forward.3} parent=79 // pred_check
        %p1412 = pneg %p326
      $region82: #{transformer_decoder_forward.3} parent=79 // pred_check_branch
        %1414 = sbr.rel (%p1412) target = $region84
      $region83: #{transformer_decoder_forward.3} parent=79 // pred_region
        %p1415 = scmp.lt.s32.totalorder %s25, 1
        %s1416 = scalar_select %p1415, %s25, 1
        %s1417 = smul.addr %s1416, 8
        %s1418 = scalar_lea.vmem %s13, %s1417
      $region84: #{transformer_decoder_forward.3} parent=79 // pred_fallthru
        _
    $region80: #{transformer_decoder_forward.3} parent=5 // pred_fallthru
      _
  $region6: #{transformer_decoder_forward.3} parent=0 // loop_footer
    %s23 = sadd.s32 1, %s19
  $region7: #{transformer_decoder_forward.3} parent=0 // loop_footer_branch
    %18 = sbr.rel target = $region3
  $region8: #{transformer_decoder_forward.3} parent=0 // loop_exit
    _

</llo_original>
